<compile_context>
chip_gen: v6e
topology: v6e:2x2x1
jax: 0.10.0
libtpu: 0.0.40
codegen_flags: <defaults>
</compile_context>

<pallas_src>
import math

import jax
import jax.numpy as jnp
from jax.experimental import pallas as pl
from jax.experimental.pallas import tpu as pltpu


def _pick_batch_block(B, T, target_rows=256):
    """Number of batch elements folded into one grid step.

    Aims for >= target_rows matmul rows per step (fills the 256-wide MXU on
    v6e/v7x) while keeping at least two "parallel" grid steps when the batch
    allows it (v7x has two TensorCores per chip)."""
    tb = max(1, min(B, target_rows // max(T, 1)))
    if B >= 2 and B // tb < 2:
        tb = max(1, B // 2)
    while B % tb:
        tb -= 1
    return tb


def _make_kernel(TB, T, C, n_head, H, NH, inv_sqrt_c, with_attn):
    def kernel(*refs):
        if with_attn:
            x_ref, wqkv_ref, wp_ref, bp_ref, out_ref, attn_ref, acc_ref = refs
        else:
            x_ref, wqkv_ref, wp_ref, bp_ref, out_ref, acc_ref = refs

        # ---- fused QKV projection: one wide bf16 matmul over TB*T rows -----
        x_flat = x_ref[...].reshape(TB * T, C)                    # f32
        qkv = jnp.dot(x_flat.astype(jnp.bfloat16), wqkv_ref[...],
                      preferred_element_type=jnp.float32)         # (TB*T, 3*NH)

        # positional iotas, hoisted out of the per-(batch, head) loops
        ii = jax.lax.broadcasted_iota(jnp.int32, (T, T), 0).astype(jnp.float32)
        jj = jax.lax.broadcasted_iota(jnp.int32, (T, T), 1).astype(jnp.float32)
        ij = ii * jj * (H * inv_sqrt_c)                           # i*j*H/sqrt(C)

        for b in range(TB):                                       # static, small
            r0 = b * T
            for h in range(n_head):                               # static, small
                c0 = h * H
                # 1/sqrt(C) folded into q (T*H mul instead of T*T)
                q0 = qkv[r0:r0 + T, c0:c0 + H] * inv_sqrt_c       # (T, H) f32
                k0 = qkv[r0:r0 + T, NH + c0:NH + c0 + H]
                vh = qkv[r0:r0 + T, 2 * NH + c0:2 * NH + c0 + H]

                # bf16 MXU matmul for the activation part of QK^T
                s0 = jax.lax.dot_general(
                    q0.astype(jnp.bfloat16), k0.astype(jnp.bfloat16),
                    (((1,), (1,)), ((), ())),
                    preferred_element_type=jnp.float32)           # (T, T)

                # exact rank-1 positional corrections in f32 (VPU):
                # (q0+i)·(k0+j)/√C = q0·k0/√C + i·Σk0/√C + j·Σq0/√C + i·j·H/√C
                sum_q = jnp.sum(q0, axis=-1, keepdims=True)              # (T,1)
                sum_k = jnp.transpose(
                    jnp.sum(k0, axis=-1, keepdims=True)) * inv_sqrt_c    # (1,T)
                scores = s0 + ii * sum_k + sum_q * jj + ij

                m = jnp.max(scores, axis=-1, keepdims=True)
                e = jnp.exp(scores - m)                           # unnormalized
                s = jnp.sum(e, axis=-1, keepdims=True)

                if with_attn:
                    inv = 1.0 / s          # exact: returned attn rows sum to 1
                    attn_ref[b, h] = (e * inv).astype(attn_ref.dtype)
                else:
                    inv = pl.reciprocal(s, approx=True)           # EUP slot
                # TODO(synk): dropout on probs is identity at inference.

                # deferred normalization: (e @ v) * inv, written straight into
                # the concat scratch at this head's static slice
                out_h = jnp.dot(e.astype(jnp.bfloat16), vh.astype(jnp.bfloat16),
                                preferred_element_type=jnp.float32) * inv
                acc_ref[r0:r0 + T, c0:c0 + H] = out_h

        # ---- output projection on the concatenated heads (no HBM trip) ------
        y = jnp.dot(acc_ref[...].astype(jnp.bfloat16), wp_ref[...],
                    preferred_element_type=jnp.float32) + bp_ref[...]
        out_ref[...] = y.reshape(TB, T, C).astype(out_ref.dtype)

    return kernel


def multi_head_attention(x, wq, wk, wv, wp, bp, *, return_attn=True,
                         attn_dtype=jnp.float32, batch_block=None):
    """Full MultiHeadAttention forward (decoder=False, alibi=False).

    x : (B, T, C) activations
    wq, wk, wv : (n_head, C, H) per-head Linear weights (pre-transposed)
    wp : (n_head*H, C) projection weight (pre-transposed); bp : (1, C) bias

    Returns (res (B, T, C), [per-head attn map (B, T, T)]) or (res, None)
    when return_attn=False.
    """
    B, T, C = x.shape
    n_head, _, H = wq.shape
    NH = n_head * H
    inv_sqrt_c = 1.0 / math.sqrt(C)     # module scales by channels**0.5 == n_embd

    # ---- one-time host-side packing; weights cast to bf16 once here --------
    wq_all = jnp.transpose(wq, (1, 0, 2)).reshape(C, NH)
    wk_all = jnp.transpose(wk, (1, 0, 2)).reshape(C, NH)
    wv_all = jnp.transpose(wv, (1, 0, 2)).reshape(C, NH)
    w_qkv = jnp.concatenate([wq_all, wk_all, wv_all], axis=-1).astype(jnp.bfloat16)
    wp_bf = wp.astype(jnp.bfloat16)

    TB = batch_block if batch_block is not None else _pick_batch_block(B, T)
    assert B % TB == 0, "batch_block must divide the batch"

    kernel = _make_kernel(TB, T, C, n_head, H, NH, inv_sqrt_c, return_attn)

    in_specs = [
        pl.BlockSpec((TB, T, C), lambda i: (i, 0, 0)),        # x
        pl.BlockSpec((C, 3 * NH), lambda i: (0, 0)),          # W_qkv (resident)
        pl.BlockSpec((NH, C), lambda i: (0, 0)),              # W_proj (resident)
        pl.BlockSpec((1, C), lambda i: (0, 0)),               # b_proj (resident)
    ]
    out_specs = [pl.BlockSpec((TB, T, C), lambda i: (i, 0, 0))]
    out_shapes = [jax.ShapeDtypeStruct((B, T, C), jnp.float32)]
    if return_attn:
        out_specs.append(pl.BlockSpec((TB, n_head, T, T), lambda i: (i, 0, 0, 0)))
        out_shapes.append(jax.ShapeDtypeStruct((B, n_head, T, T), attn_dtype))

    outs = pl.pallas_call(
        kernel,
        out_shape=out_shapes,
        grid_spec=pltpu.PrefetchScalarGridSpec(
            num_scalar_prefetch=0,
            grid=(B // TB,),
            in_specs=in_specs,
            out_specs=out_specs,
            scratch_shapes=[pltpu.VMEM((TB * T, NH), jnp.float32)],
        ),
        compiler_params=pltpu.CompilerParams(
            dimension_semantics=("parallel",)),
    )(x, w_qkv, wp_bf, bp)

    res = outs[0]
    if return_attn:
        attn = outs[1]
        return res, [attn[:, h] for h in range(n_head)]
    return res, None


# ----------------------------------------------------------------------------
# Pure-JAX reference for the correctness check
# ----------------------------------------------------------------------------
def reference(x, wq, wk, wv, wp, bp):
    B, T, C = x.shape
    n_head = wq.shape[0]
    outs, maps = [], []
    pos = jnp.arange(T, dtype=jnp.float32)[None, :, None]
    for h in range(n_head):
        q = x @ wq[h] + pos
        k = x @ wk[h] + pos
        v = x @ wv[h]
        scores = (q @ jnp.swapaxes(k, -2, -1)) / jnp.sqrt(jnp.float32(C))
        probs = jax.nn.softmax(scores, axis=-1)
        outs.append(probs @ v)
        maps.append(probs)
    cat = jnp.concatenate(outs, axis=-1)
    return cat @ wp + bp[0], maps


if __name__ == "__main__":
    # Small, TPU-friendly sizes consistent with the module; B=4 exercises both
    # the batch-folding (TB=2) and the 2-step "parallel" grid.
    B, T = 4, 8           # batch, time (block_size >= time)
    n_embd = 32
    n_head = 2
    head_size = 16

    key = jax.random.PRNGKey(0)
    kx, kq, kk, kv, kp, kb = jax.random.split(key, 6)

    x = jax.random.normal(kx, (B, T, n_embd), dtype=jnp.float32)
    # per-head Linear weights, pre-transposed: (n_head, n_embd, head_size)
    wq = 0.05 * jax.random.normal(kq, (n_head, n_embd, head_size), dtype=jnp.float32)
    wk = 0.05 * jax.random.normal(kk, (n_head, n_embd, head_size), dtype=jnp.float32)
    wv = 0.05 * jax.random.normal(kv, (n_head, n_embd, head_size), dtype=jnp.float32)
    # projection Linear: weight (n_head*head_size, n_embd), bias (1, n_embd)
    wp = 0.05 * jax.random.normal(kp, (n_head * head_size, n_embd), dtype=jnp.float32)
    bp = 0.05 * jax.random.normal(kb, (1, n_embd), dtype=jnp.float32)

    res, attn_maps = multi_head_attention(x, wq, wk, wv, wp, bp)
    res = jax.block_until_ready(res)
    attn_maps = [jax.block_until_ready(a) for a in attn_maps]

    res_ref, maps_ref = reference(x, wq, wk, wv, wp, bp)
    # bf16 MXU operands (bf16 weights + bf16 PV matmul) vs. the f32 reference.
    assert jnp.allclose(res, res_ref, atol=2e-2, rtol=2e-2), "projection output mismatch"
    for a, r in zip(attn_maps, maps_ref):
        assert jnp.allclose(a, r, atol=2e-2, rtol=2e-2), "attention map mismatch"
    # exact-reciprocal normalization: returned attention rows sum to 1
    for a in attn_maps:
        assert jnp.allclose(jnp.sum(a, axis=-1), 1.0, atol=1e-3), "attn rows not normalized"

    # attn-map-free fast path (skips the (B, n_head, T, T) writeback entirely)
    res2, none_maps = multi_head_attention(x, wq, wk, wv, wp, bp, return_attn=False)
    res2 = jax.block_until_ready(res2)
    assert none_maps is None
    assert jnp.allclose(res2, res_ref, atol=2e-2, rtol=2e-2), "fast-path output mismatch"

    print("KERNEL_OK")
</pallas_src>

<mosaic_0001>
module attributes {stable_mosaic.version = 11 : i64} {
  func.func @kernel(%arg0: i32, %arg1: memref<2x8x32xf32, #tpu.memory_space<vmem>>, %arg2: memref<32x96xbf16, #tpu.memory_space<vmem>>, %arg3: memref<32x32xbf16, #tpu.memory_space<vmem>>, %arg4: memref<1x32xf32, #tpu.memory_space<vmem>>, %arg5: memref<2x8x32xf32, #tpu.memory_space<vmem>>, %arg6: memref<2x2x8x8xf32, #tpu.memory_space<vmem>>, %arg7: memref<16x32xf32, #tpu.memory_space<vmem>>) attributes {dimension_semantics = [#tpu.dimension_semantics<parallel>], iteration_bounds = array<i64: 2>, scalar_prefetch = 0 : i64, scratch_operands = 1 : i64, tpu.core_type = #tpu.core_type<tc>, window_params = [{transform_indices = @transform_0, window_bounds = array<i64: 2, 8, 32>}, {pipeline_mode = #tpu.pipeline_mode<synchronous>, transform_indices = @transform_1, window_bounds = array<i64: 32, 96>}, {pipeline_mode = #tpu.pipeline_mode<synchronous>, transform_indices = @transform_2, window_bounds = array<i64: 32, 32>}, {pipeline_mode = #tpu.pipeline_mode<synchronous>, transform_indices = @transform_3, window_bounds = array<i64: 1, 32>}, {transform_indices = @transform_4, window_bounds = array<i64: 2, 8, 32>}, {transform_indices = @transform_5, window_bounds = array<i64: 2, 2, 8, 8>}]} {
    %c0 = arith.constant 0 : index
    %c0_0 = arith.constant 0 : index
    %c0_1 = arith.constant 0 : index
    %0 = vector.load %arg1[%c0, %c0_0, %c0_1] : memref<2x8x32xf32, #tpu.memory_space<vmem>>, vector<2x8x32xf32>
    %1 = vector.shape_cast %0 : vector<2x8x32xf32> to vector<16x32xf32>
    %2 = arith.truncf %1 : vector<16x32xf32> to vector<16x32xbf16>
    %c0_2 = arith.constant 0 : index
    %c0_3 = arith.constant 0 : index
    %3 = vector.load %arg2[%c0_2, %c0_3] : memref<32x96xbf16, #tpu.memory_space<vmem>>, vector<32x96xbf16>
    %cst = arith.constant dense<0.000000e+00> : vector<16x96xf32>
    %4 = tpu.matmul %2, %3, %cst {dimension_numbers = #tpu.dot_dimension_numbers<[1], [0], [0], [1], [0, 0, 1, 1], [], []>} : vector<16x32xbf16>, vector<32x96xbf16>, vector<16x96xf32> -> vector<16x96xf32>
    %5 = tpu.iota {dimensions = array<i32: 0>} : vector<8x8xi32>
    %6 = arith.sitofp %5 : vector<8x8xi32> to vector<8x8xf32>
    %7 = tpu.iota {dimensions = array<i32: 1>} : vector<8x8xi32>
    %8 = arith.sitofp %7 : vector<8x8xi32> to vector<8x8xf32>
    %9 = arith.mulf %6, %8 : vector<8x8xf32>
    %cst_4 = arith.constant 2.82842708 : f32
    %10 = vector.broadcast %cst_4 : f32 to vector<8x8xf32>
    %11 = arith.mulf %9, %10 : vector<8x8xf32>
    %12 = vector.extract_strided_slice %4 {offsets = [0, 0], sizes = [8, 16], strides = [1, 1]} : vector<16x96xf32> to vector<8x16xf32>
    %cst_5 = arith.constant 0.176776692 : f32
    %13 = vector.broadcast %cst_5 : f32 to vector<8x16xf32>
    %14 = arith.mulf %12, %13 : vector<8x16xf32>
    %15 = vector.extract_strided_slice %4 {offsets = [0, 32], sizes = [8, 16], strides = [1, 1]} : vector<16x96xf32> to vector<8x16xf32>
    %16 = vector.extract_strided_slice %4 {offsets = [0, 64], sizes = [8, 16], strides = [1, 1]} : vector<16x96xf32> to vector<8x16xf32>
    %17 = arith.truncf %14 : vector<8x16xf32> to vector<8x16xbf16>
    %18 = arith.truncf %15 : vector<8x16xf32> to vector<8x16xbf16>
    %cst_6 = arith.constant dense<0.000000e+00> : vector<8x8xf32>
    %19 = tpu.matmul %17, %18, %cst_6 {dimension_numbers = #tpu.dot_dimension_numbers<[1], [1], [0], [0], [0, 0, 1, 0], [], []>} : vector<8x16xbf16>, vector<8x16xbf16>, vector<8x8xf32> -> vector<8x8xf32>
    %cst_7 = arith.constant dense<0.000000e+00> : vector<8xf32>
    %20 = vector.multi_reduction <add>, %14, %cst_7 [1] : vector<8x16xf32> to vector<8xf32>
    %21 = vector.shape_cast %20 : vector<8xf32> to vector<8x1xf32>
    %cst_8 = arith.constant dense<0.000000e+00> : vector<8xf32>
    %22 = vector.multi_reduction <add>, %15, %cst_8 [1] : vector<8x16xf32> to vector<8xf32>
    %23 = vector.shape_cast %22 : vector<8xf32> to vector<8x1xf32>
    %24 = tpu.transpose %23, [1, 0] : vector<8x1xf32> -> vector<1x8xf32>
    %cst_9 = arith.constant 0.176776692 : f32
    %25 = vector.broadcast %cst_9 : f32 to vector<1x8xf32>
    %26 = arith.mulf %24, %25 : vector<1x8xf32>
    %27 = vector.broadcast %26 : vector<1x8xf32> to vector<8x8xf32>
    %28 = arith.mulf %6, %27 : vector<8x8xf32>
    %29 = arith.addf %19, %28 : vector<8x8xf32>
    %30 = vector.broadcast %21 : vector<8x1xf32> to vector<8x8xf32>
    %31 = arith.mulf %30, %8 : vector<8x8xf32>
    %32 = arith.addf %29, %31 : vector<8x8xf32>
    %33 = arith.addf %32, %11 : vector<8x8xf32>
    %cst_10 = arith.constant dense<0xFF800000> : vector<8xf32>
    %34 = vector.multi_reduction <maximumf>, %33, %cst_10 [1] : vector<8x8xf32> to vector<8xf32>
    %35 = vector.shape_cast %34 : vector<8xf32> to vector<8x1xf32>
    %36 = vector.broadcast %35 : vector<8x1xf32> to vector<8x8xf32>
    %37 = arith.subf %33, %36 : vector<8x8xf32>
    %38 = math.exp %37 : vector<8x8xf32>
    %cst_11 = arith.constant dense<0.000000e+00> : vector<8xf32>
    %39 = vector.multi_reduction <add>, %38, %cst_11 [1] : vector<8x8xf32> to vector<8xf32>
    %40 = vector.shape_cast %39 : vector<8xf32> to vector<8x1xf32>
    %cst_12 = arith.constant 1.000000e+00 : f32
    %41 = vector.broadcast %cst_12 : f32 to vector<8x1xf32>
    %42 = arith.divf %41, %40 : vector<8x1xf32>
    %43 = vector.broadcast %42 : vector<8x1xf32> to vector<8x8xf32>
    %44 = arith.mulf %38, %43 : vector<8x8xf32>
    %c0_13 = arith.constant 0 : index
    %c0_14 = arith.constant 0 : index
    %c0_15 = arith.constant 0 : index
    %c0_16 = arith.constant 0 : index
    %45 = vector.load %arg6[%c0_13, %c0_14, %c0_15, %c0_16] : memref<2x2x8x8xf32, #tpu.memory_space<vmem>>, vector<1x1x8x8xf32>
    %46 = vector.shape_cast %45 : vector<1x1x8x8xf32> to vector<8x8xf32>
    %47 = vector.shape_cast %44 : vector<8x8xf32> to vector<1x1x8x8xf32>
    tpu.vector_store %arg6[%c0_13, %c0_14, %c0_15, %c0_16], %47 {strides = array<i32>} : memref<2x2x8x8xf32, #tpu.memory_space<vmem>>, vector<1x1x8x8xf32>,
    %48 = arith.truncf %38 : vector<8x8xf32> to vector<8x8xbf16>
    %49 = arith.truncf %16 : vector<8x16xf32> to vector<8x16xbf16>
    %cst_17 = arith.constant dense<0.000000e+00> : vector<8x16xf32>
    %50 = tpu.matmul %48, %49, %cst_17 {dimension_numbers = #tpu.dot_dimension_numbers<[1], [0], [0], [1], [0, 0, 1, 1], [], []>} : vector<8x8xbf16>, vector<8x16xbf16>, vector<8x16xf32> -> vector<8x16xf32>
    %51 = vector.broadcast %42 : vector<8x1xf32> to vector<8x16xf32>
    %52 = arith.mulf %50, %51 : vector<8x16xf32>
    %c0_18 = arith.constant 0 : index
    %c0_19 = arith.constant 0 : index
    %53 = vector.load %arg7[%c0_18, %c0_19] : memref<16x32xf32, #tpu.memory_space<vmem>>, vector<8x16xf32>
    tpu.vector_store %arg7[%c0_18, %c0_19], %52 {strides = array<i32>} : memref<16x32xf32, #tpu.memory_space<vmem>>, vector<8x16xf32>,
    %54 = vector.extract_strided_slice %4 {offsets = [0, 16], sizes = [8, 16], strides = [1, 1]} : vector<16x96xf32> to vector<8x16xf32>
    %cst_20 = arith.constant 0.176776692 : f32
    %55 = vector.broadcast %cst_20 : f32 to vector<8x16xf32>
    %56 = arith.mulf %54, %55 : vector<8x16xf32>
    %57 = vector.extract_strided_slice %4 {offsets = [0, 48], sizes = [8, 16], strides = [1, 1]} : vector<16x96xf32> to vector<8x16xf32>
    %58 = vector.extract_strided_slice %4 {offsets = [0, 80], sizes = [8, 16], strides = [1, 1]} : vector<16x96xf32> to vector<8x16xf32>
    %59 = arith.truncf %56 : vector<8x16xf32> to vector<8x16xbf16>
    %60 = arith.truncf %57 : vector<8x16xf32> to vector<8x16xbf16>
    %cst_21 = arith.constant dense<0.000000e+00> : vector<8x8xf32>
    %61 = tpu.matmul %59, %60, %cst_21 {dimension_numbers = #tpu.dot_dimension_numbers<[1], [1], [0], [0], [0, 0, 1, 0], [], []>} : vector<8x16xbf16>, vector<8x16xbf16>, vector<8x8xf32> -> vector<8x8xf32>
    %cst_22 = arith.constant dense<0.000000e+00> : vector<8xf32>
    %62 = vector.multi_reduction <add>, %56, %cst_22 [1] : vector<8x16xf32> to vector<8xf32>
    %63 = vector.shape_cast %62 : vector<8xf32> to vector<8x1xf32>
    %cst_23 = arith.constant dense<0.000000e+00> : vector<8xf32>
    %64 = vector.multi_reduction <add>, %57, %cst_23 [1] : vector<8x16xf32> to vector<8xf32>
    %65 = vector.shape_cast %64 : vector<8xf32> to vector<8x1xf32>
    %66 = tpu.transpose %65, [1, 0] : vector<8x1xf32> -> vector<1x8xf32>
    %cst_24 = arith.constant 0.176776692 : f32
    %67 = vector.broadcast %cst_24 : f32 to vector<1x8xf32>
    %68 = arith.mulf %66, %67 : vector<1x8xf32>
    %69 = vector.broadcast %68 : vector<1x8xf32> to vector<8x8xf32>
    %70 = arith.mulf %6, %69 : vector<8x8xf32>
    %71 = arith.addf %61, %70 : vector<8x8xf32>
    %72 = vector.broadcast %63 : vector<8x1xf32> to vector<8x8xf32>
    %73 = arith.mulf %72, %8 : vector<8x8xf32>
    %74 = arith.addf %71, %73 : vector<8x8xf32>
    %75 = arith.addf %74, %11 : vector<8x8xf32>
    %cst_25 = arith.constant dense<0xFF800000> : vector<8xf32>
    %76 = vector.multi_reduction <maximumf>, %75, %cst_25 [1] : vector<8x8xf32> to vector<8xf32>
    %77 = vector.shape_cast %76 : vector<8xf32> to vector<8x1xf32>
    %78 = vector.broadcast %77 : vector<8x1xf32> to vector<8x8xf32>
    %79 = arith.subf %75, %78 : vector<8x8xf32>
    %80 = math.exp %79 : vector<8x8xf32>
    %cst_26 = arith.constant dense<0.000000e+00> : vector<8xf32>
    %81 = vector.multi_reduction <add>, %80, %cst_26 [1] : vector<8x8xf32> to vector<8xf32>
    %82 = vector.shape_cast %81 : vector<8xf32> to vector<8x1xf32>
    %cst_27 = arith.constant 1.000000e+00 : f32
    %83 = vector.broadcast %cst_27 : f32 to vector<8x1xf32>
    %84 = arith.divf %83, %82 : vector<8x1xf32>
    %85 = vector.broadcast %84 : vector<8x1xf32> to vector<8x8xf32>
    %86 = arith.mulf %80, %85 : vector<8x8xf32>
    %c0_28 = arith.constant 0 : index
    %c1 = arith.constant 1 : index
    %c0_29 = arith.constant 0 : index
    %c0_30 = arith.constant 0 : index
    %87 = vector.load %arg6[%c0_28, %c1, %c0_29, %c0_30] : memref<2x2x8x8xf32, #tpu.memory_space<vmem>>, vector<1x1x8x8xf32>
    %88 = vector.shape_cast %87 : vector<1x1x8x8xf32> to vector<8x8xf32>
    %89 = vector.shape_cast %86 : vector<8x8xf32> to vector<1x1x8x8xf32>
    tpu.vector_store %arg6[%c0_28, %c1, %c0_29, %c0_30], %89 {strides = array<i32>} : memref<2x2x8x8xf32, #tpu.memory_space<vmem>>, vector<1x1x8x8xf32>,
    %90 = arith.truncf %80 : vector<8x8xf32> to vector<8x8xbf16>
    %91 = arith.truncf %58 : vector<8x16xf32> to vector<8x16xbf16>
    %cst_31 = arith.constant dense<0.000000e+00> : vector<8x16xf32>
    %92 = tpu.matmul %90, %91, %cst_31 {dimension_numbers = #tpu.dot_dimension_numbers<[1], [0], [0], [1], [0, 0, 1, 1], [], []>} : vector<8x8xbf16>, vector<8x16xbf16>, vector<8x16xf32> -> vector<8x16xf32>
    %93 = vector.broadcast %84 : vector<8x1xf32> to vector<8x16xf32>
    %94 = arith.mulf %92, %93 : vector<8x16xf32>
    %c0_32 = arith.constant 0 : index
    %c16 = arith.constant 16 : index
    %95 = vector.load %arg7[%c0_32, %c16] : memref<16x32xf32, #tpu.memory_space<vmem>>, vector<8x16xf32>
    tpu.vector_store %arg7[%c0_32, %c16], %94 {strides = array<i32>} : memref<16x32xf32, #tpu.memory_space<vmem>>, vector<8x16xf32>,
    %96 = vector.extract_strided_slice %4 {offsets = [8, 0], sizes = [8, 16], strides = [1, 1]} : vector<16x96xf32> to vector<8x16xf32>
    %cst_33 = arith.constant 0.176776692 : f32
    %97 = vector.broadcast %cst_33 : f32 to vector<8x16xf32>
    %98 = arith.mulf %96, %97 : vector<8x16xf32>
    %99 = vector.extract_strided_slice %4 {offsets = [8, 32], sizes = [8, 16], strides = [1, 1]} : vector<16x96xf32> to vector<8x16xf32>
    %100 = vector.extract_strided_slice %4 {offsets = [8, 64], sizes = [8, 16], strides = [1, 1]} : vector<16x96xf32> to vector<8x16xf32>
    %101 = arith.truncf %98 : vector<8x16xf32> to vector<8x16xbf16>
    %102 = arith.truncf %99 : vector<8x16xf32> to vector<8x16xbf16>
    %cst_34 = arith.constant dense<0.000000e+00> : vector<8x8xf32>
    %103 = tpu.matmul %101, %102, %cst_34 {dimension_numbers = #tpu.dot_dimension_numbers<[1], [1], [0], [0], [0, 0, 1, 0], [], []>} : vector<8x16xbf16>, vector<8x16xbf16>, vector<8x8xf32> -> vector<8x8xf32>
    %cst_35 = arith.constant dense<0.000000e+00> : vector<8xf32>
    %104 = vector.multi_reduction <add>, %98, %cst_35 [1] : vector<8x16xf32> to vector<8xf32>
    %105 = vector.shape_cast %104 : vector<8xf32> to vector<8x1xf32>
    %cst_36 = arith.constant dense<0.000000e+00> : vector<8xf32>
    %106 = vector.multi_reduction <add>, %99, %cst_36 [1] : vector<8x16xf32> to vector<8xf32>
    %107 = vector.shape_cast %106 : vector<8xf32> to vector<8x1xf32>
    %108 = tpu.transpose %107, [1, 0] : vector<8x1xf32> -> vector<1x8xf32>
    %cst_37 = arith.constant 0.176776692 : f32
    %109 = vector.broadcast %cst_37 : f32 to vector<1x8xf32>
    %110 = arith.mulf %108, %109 : vector<1x8xf32>
    %111 = vector.broadcast %110 : vector<1x8xf32> to vector<8x8xf32>
    %112 = arith.mulf %6, %111 : vector<8x8xf32>
    %113 = arith.addf %103, %112 : vector<8x8xf32>
    %114 = vector.broadcast %105 : vector<8x1xf32> to vector<8x8xf32>
    %115 = arith.mulf %114, %8 : vector<8x8xf32>
    %116 = arith.addf %113, %115 : vector<8x8xf32>
    %117 = arith.addf %116, %11 : vector<8x8xf32>
    %cst_38 = arith.constant dense<0xFF800000> : vector<8xf32>
    %118 = vector.multi_reduction <maximumf>, %117, %cst_38 [1] : vector<8x8xf32> to vector<8xf32>
    %119 = vector.shape_cast %118 : vector<8xf32> to vector<8x1xf32>
    %120 = vector.broadcast %119 : vector<8x1xf32> to vector<8x8xf32>
    %121 = arith.subf %117, %120 : vector<8x8xf32>
    %122 = math.exp %121 : vector<8x8xf32>
    %cst_39 = arith.constant dense<0.000000e+00> : vector<8xf32>
    %123 = vector.multi_reduction <add>, %122, %cst_39 [1] : vector<8x8xf32> to vector<8xf32>
    %124 = vector.shape_cast %123 : vector<8xf32> to vector<8x1xf32>
    %cst_40 = arith.constant 1.000000e+00 : f32
    %125 = vector.broadcast %cst_40 : f32 to vector<8x1xf32>
    %126 = arith.divf %125, %124 : vector<8x1xf32>
    %127 = vector.broadcast %126 : vector<8x1xf32> to vector<8x8xf32>
    %128 = arith.mulf %122, %127 : vector<8x8xf32>
    %c1_41 = arith.constant 1 : index
    %c0_42 = arith.constant 0 : index
    %c0_43 = arith.constant 0 : index
    %c0_44 = arith.constant 0 : index
    %129 = vector.load %arg6[%c1_41, %c0_42, %c0_43, %c0_44] : memref<2x2x8x8xf32, #tpu.memory_space<vmem>>, vector<1x1x8x8xf32>
    %130 = vector.shape_cast %129 : vector<1x1x8x8xf32> to vector<8x8xf32>
    %131 = vector.shape_cast %128 : vector<8x8xf32> to vector<1x1x8x8xf32>
    tpu.vector_store %arg6[%c1_41, %c0_42, %c0_43, %c0_44], %131 {strides = array<i32>} : memref<2x2x8x8xf32, #tpu.memory_space<vmem>>, vector<1x1x8x8xf32>,
    %132 = arith.truncf %122 : vector<8x8xf32> to vector<8x8xbf16>
    %133 = arith.truncf %100 : vector<8x16xf32> to vector<8x16xbf16>
    %cst_45 = arith.constant dense<0.000000e+00> : vector<8x16xf32>
    %134 = tpu.matmul %132, %133, %cst_45 {dimension_numbers = #tpu.dot_dimension_numbers<[1], [0], [0], [1], [0, 0, 1, 1], [], []>} : vector<8x8xbf16>, vector<8x16xbf16>, vector<8x16xf32> -> vector<8x16xf32>
    %135 = vector.broadcast %126 : vector<8x1xf32> to vector<8x16xf32>
    %136 = arith.mulf %134, %135 : vector<8x16xf32>
    %c8 = arith.constant 8 : index
    %c0_46 = arith.constant 0 : index
    %137 = vector.load %arg7[%c8, %c0_46] : memref<16x32xf32, #tpu.memory_space<vmem>>, vector<8x16xf32>
    tpu.vector_store %arg7[%c8, %c0_46], %136 {strides = array<i32>} : memref<16x32xf32, #tpu.memory_space<vmem>>, vector<8x16xf32>,
    %138 = vector.extract_strided_slice %4 {offsets = [8, 16], sizes = [8, 16], strides = [1, 1]} : vector<16x96xf32> to vector<8x16xf32>
    %cst_47 = arith.constant 0.176776692 : f32
    %139 = vector.broadcast %cst_47 : f32 to vector<8x16xf32>
    %140 = arith.mulf %138, %139 : vector<8x16xf32>
    %141 = vector.extract_strided_slice %4 {offsets = [8, 48], sizes = [8, 16], strides = [1, 1]} : vector<16x96xf32> to vector<8x16xf32>
    %142 = vector.extract_strided_slice %4 {offsets = [8, 80], sizes = [8, 16], strides = [1, 1]} : vector<16x96xf32> to vector<8x16xf32>
    %143 = arith.truncf %140 : vector<8x16xf32> to vector<8x16xbf16>
    %144 = arith.truncf %141 : vector<8x16xf32> to vector<8x16xbf16>
    %cst_48 = arith.constant dense<0.000000e+00> : vector<8x8xf32>
    %145 = tpu.matmul %143, %144, %cst_48 {dimension_numbers = #tpu.dot_dimension_numbers<[1], [1], [0], [0], [0, 0, 1, 0], [], []>} : vector<8x16xbf16>, vector<8x16xbf16>, vector<8x8xf32> -> vector<8x8xf32>
    %cst_49 = arith.constant dense<0.000000e+00> : vector<8xf32>
    %146 = vector.multi_reduction <add>, %140, %cst_49 [1] : vector<8x16xf32> to vector<8xf32>
    %147 = vector.shape_cast %146 : vector<8xf32> to vector<8x1xf32>
    %cst_50 = arith.constant dense<0.000000e+00> : vector<8xf32>
    %148 = vector.multi_reduction <add>, %141, %cst_50 [1] : vector<8x16xf32> to vector<8xf32>
    %149 = vector.shape_cast %148 : vector<8xf32> to vector<8x1xf32>
    %150 = tpu.transpose %149, [1, 0] : vector<8x1xf32> -> vector<1x8xf32>
    %cst_51 = arith.constant 0.176776692 : f32
    %151 = vector.broadcast %cst_51 : f32 to vector<1x8xf32>
    %152 = arith.mulf %150, %151 : vector<1x8xf32>
    %153 = vector.broadcast %152 : vector<1x8xf32> to vector<8x8xf32>
    %154 = arith.mulf %6, %153 : vector<8x8xf32>
    %155 = arith.addf %145, %154 : vector<8x8xf32>
    %156 = vector.broadcast %147 : vector<8x1xf32> to vector<8x8xf32>
    %157 = arith.mulf %156, %8 : vector<8x8xf32>
    %158 = arith.addf %155, %157 : vector<8x8xf32>
    %159 = arith.addf %158, %11 : vector<8x8xf32>
    %cst_52 = arith.constant dense<0xFF800000> : vector<8xf32>
    %160 = vector.multi_reduction <maximumf>, %159, %cst_52 [1] : vector<8x8xf32> to vector<8xf32>
    %161 = vector.shape_cast %160 : vector<8xf32> to vector<8x1xf32>
    %162 = vector.broadcast %161 : vector<8x1xf32> to vector<8x8xf32>
    %163 = arith.subf %159, %162 : vector<8x8xf32>
    %164 = math.exp %163 : vector<8x8xf32>
    %cst_53 = arith.constant dense<0.000000e+00> : vector<8xf32>
    %165 = vector.multi_reduction <add>, %164, %cst_53 [1] : vector<8x8xf32> to vector<8xf32>
    %166 = vector.shape_cast %165 : vector<8xf32> to vector<8x1xf32>
    %cst_54 = arith.constant 1.000000e+00 : f32
    %167 = vector.broadcast %cst_54 : f32 to vector<8x1xf32>
    %168 = arith.divf %167, %166 : vector<8x1xf32>
    %169 = vector.broadcast %168 : vector<8x1xf32> to vector<8x8xf32>
    %170 = arith.mulf %164, %169 : vector<8x8xf32>
    %c1_55 = arith.constant 1 : index
    %c1_56 = arith.constant 1 : index
    %c0_57 = arith.constant 0 : index
    %c0_58 = arith.constant 0 : index
    %171 = vector.load %arg6[%c1_55, %c1_56, %c0_57, %c0_58] : memref<2x2x8x8xf32, #tpu.memory_space<vmem>>, vector<1x1x8x8xf32>
    %172 = vector.shape_cast %171 : vector<1x1x8x8xf32> to vector<8x8xf32>
    %173 = vector.shape_cast %170 : vector<8x8xf32> to vector<1x1x8x8xf32>
    tpu.vector_store %arg6[%c1_55, %c1_56, %c0_57, %c0_58], %173 {strides = array<i32>} : memref<2x2x8x8xf32, #tpu.memory_space<vmem>>, vector<1x1x8x8xf32>,
    %174 = arith.truncf %164 : vector<8x8xf32> to vector<8x8xbf16>
    %175 = arith.truncf %142 : vector<8x16xf32> to vector<8x16xbf16>
    %cst_59 = arith.constant dense<0.000000e+00> : vector<8x16xf32>
    %176 = tpu.matmul %174, %175, %cst_59 {dimension_numbers = #tpu.dot_dimension_numbers<[1], [0], [0], [1], [0, 0, 1, 1], [], []>} : vector<8x8xbf16>, vector<8x16xbf16>, vector<8x16xf32> -> vector<8x16xf32>
    %177 = vector.broadcast %168 : vector<8x1xf32> to vector<8x16xf32>
    %178 = arith.mulf %176, %177 : vector<8x16xf32>
    %c8_60 = arith.constant 8 : index
    %c16_61 = arith.constant 16 : index
    %179 = vector.load %arg7[%c8_60, %c16_61] : memref<16x32xf32, #tpu.memory_space<vmem>>, vector<8x16xf32>
    tpu.vector_store %arg7[%c8_60, %c16_61], %178 {strides = array<i32>} : memref<16x32xf32, #tpu.memory_space<vmem>>, vector<8x16xf32>,
    %c0_62 = arith.constant 0 : index
    %c0_63 = arith.constant 0 : index
    %180 = vector.load %arg7[%c0_62, %c0_63] : memref<16x32xf32, #tpu.memory_space<vmem>>, vector<16x32xf32>
    %181 = arith.truncf %180 : vector<16x32xf32> to vector<16x32xbf16>
    %c0_64 = arith.constant 0 : index
    %c0_65 = arith.constant 0 : index
    %182 = vector.load %arg3[%c0_64, %c0_65] : memref<32x32xbf16, #tpu.memory_space<vmem>>, vector<32x32xbf16>
    %cst_66 = arith.constant dense<0.000000e+00> : vector<16x32xf32>
    %183 = tpu.matmul %181, %182, %cst_66 {dimension_numbers = #tpu.dot_dimension_numbers<[1], [0], [0], [1], [0, 0, 1, 1], [], []>} : vector<16x32xbf16>, vector<32x32xbf16>, vector<16x32xf32> -> vector<16x32xf32>
    %c0_67 = arith.constant 0 : index
    %c0_68 = arith.constant 0 : index
    %184 = vector.load %arg4[%c0_67, %c0_68] : memref<1x32xf32, #tpu.memory_space<vmem>>, vector<1x32xf32>
    %185 = vector.broadcast %184 : vector<1x32xf32> to vector<16x32xf32>
    %186 = arith.addf %183, %185 : vector<16x32xf32>
    %187 = vector.shape_cast %186 : vector<16x32xf32> to vector<2x8x32xf32>
    %c0_69 = arith.constant 0 : index
    %c0_70 = arith.constant 0 : index
    %c0_71 = arith.constant 0 : index
    %188 = vector.load %arg5[%c0_69, %c0_70, %c0_71] : memref<2x8x32xf32, #tpu.memory_space<vmem>>, vector<2x8x32xf32>
    tpu.vector_store %arg5[%c0_69, %c0_70, %c0_71], %187 {strides = array<i32>} : memref<2x8x32xf32, #tpu.memory_space<vmem>>, vector<2x8x32xf32>,
    return
  }
  func.func @transform_0(%arg0: i32) -> (i32, i32, i32) {
    %c0_i32 = arith.constant 0 : i32
    %c0_i32_0 = arith.constant 0 : i32
    %c0_i32_1 = arith.constant 0 : i32
    return %arg0, %c0_i32, %c0_i32_0 : i32, i32, i32
  }
  func.func @transform_1(%arg0: i32) -> (i32, i32) {
    %c0_i32 = arith.constant 0 : i32
    %c0_i32_0 = arith.constant 0 : i32
    %c0_i32_1 = arith.constant 0 : i32
    return %c0_i32, %c0_i32_0 : i32, i32
  }
  func.func @transform_2(%arg0: i32) -> (i32, i32) {
    %c0_i32 = arith.constant 0 : i32
    %c0_i32_0 = arith.constant 0 : i32
    %c0_i32_1 = arith.constant 0 : i32
    return %c0_i32, %c0_i32_0 : i32, i32
  }
  func.func @transform_3(%arg0: i32) -> (i32, i32) {
    %c0_i32 = arith.constant 0 : i32
    %c0_i32_0 = arith.constant 0 : i32
    %c0_i32_1 = arith.constant 0 : i32
    return %c0_i32, %c0_i32_0 : i32, i32
  }
  func.func @transform_4(%arg0: i32) -> (i32, i32, i32) {
    %c0_i32 = arith.constant 0 : i32
    %c0_i32_0 = arith.constant 0 : i32
    %c0_i32_1 = arith.constant 0 : i32
    return %arg0, %c0_i32, %c0_i32_0 : i32, i32, i32
  }
  func.func @transform_5(%arg0: i32) -> (i32, i32, i32, i32) {
    %c0_i32 = arith.constant 0 : i32
    %c0_i32_0 = arith.constant 0 : i32
    %c0_i32_1 = arith.constant 0 : i32
    %c0_i32_2 = arith.constant 0 : i32
    return %arg0, %c0_i32, %c0_i32_0, %c0_i32_1 : i32, i32, i32, i32
  }
}

</mosaic_0001>

<llo_original>
// kernel: tpu_custom_call.1
$region0: #{tpu_custom_call.1}
  #allocation0 [shape = 'u32[]', space=smem, size = 0x4, offset = 0x4, fixed_abs, tag = 'smem constant byte address 0x4 - core index']
  #allocation1 [shape = 'u32[144,128]{1,0:T(1,128)}', space=vmem, size = 0x12000, scoped, tag = 'internal scratch']
  #allocation2 [shape = 'f32[16,32]{1,0:T(8,128)}', space=vmem, size = 0x2000, scoped, tag = 'scratch operand']
  %s0 = inlined_call_operand.hbm [shape: f32[4,8,32], index: 0, kind: input, shape index: {}]
  %s1 = inlined_call_operand.hbm [shape: bf16[32,96], index: 1, kind: input, shape index: {}]
  %s2 = inlined_call_operand.hbm [shape: bf16[32,32], index: 2, kind: input, shape index: {}]
  %s3 = inlined_call_operand.vmem [shape: f32[1,32], index: 3, kind: input, shape index: {}]
  %s4 = inlined_call_operand.hbm [shape: f32[4,8,32], index: 4, kind: output, shape index: {0}]
  %s5 = inlined_call_operand.hbm [shape: f32[4,2,8,8], index: 5, kind: output, shape index: {1}]
  %6 = xla_tuple %s4, %s5
  %s7 = sld [smem:[#allocation0]]
  $region69: #{tpu_custom_call.1} parent=0
    _
  %s9 = ssub.s32 1, %s7
  %s10 = scalar_select 0, %s9, %s7
  $region1: #{tpu_custom_call.1} parent=0
    #allocation3 [shape = 'u8[16384]{0}', space=vmem, size = 0x4000, scoped, tag = 'input window, operand 0']
    #allocation4 [shape = 's32[2]{0}', space=sflag, size = 0x8, scoped, tag = 'scoped memory for tpu_custom_call.1']
    #allocation5 [shape = 's32[2]{0}', space=sflag, size = 0x8, scoped, tag = 'scoped memory for tpu_custom_call.1']
    #allocation6 [shape = 'u8[8192]{0}', space=vmem, size = 0x2000, scoped, tag = 'input window, operand 1, single buffered']
    #allocation7 [shape = 's32[1]{0}', space=sflag, size = 0x4, scoped, tag = 'scoped memory for tpu_custom_call.1']
    #allocation8 [shape = 'u8[8192]{0}', space=vmem, size = 0x2000, scoped, tag = 'input window, operand 2, single buffered']
    #allocation9 [shape = 'u8[16384]{0}', space=vmem, size = 0x4000, scoped, tag = 'output window, operand 0']
    #allocation10 [shape = 'u8[32768]{0}', space=vmem, size = 0x8000, scoped, tag = 'output window, operand 1']
    #allocation11 [shape = 's32[2]{0}', space=sflag, size = 0x8, scoped, tag = 'scoped memory for tpu_custom_call.1']
    %11 = vsyncpa [#allocation4], 0
    %s12 = scalar_lea.sflag [#allocation4], 1
    %13 = vsyncpa %s12, 0
    %14 = vsyncpa [#allocation7], 0
    %15 = vsyncpa [#allocation5], 0
    %s16 = scalar_lea.sflag [#allocation5], 1
    %17 = vsyncpa %s16, 0
    %18 = vsyncpa [#allocation11], 0
    %s19 = scalar_lea.sflag [#allocation11], 1
    %20 = vsyncpa %s19, 0
    loop: start=0, step=1, limit=4
    $region2: #{tpu_custom_call.1} parent=1 // loop_pre_header
      _
    $region3: #{tpu_custom_call.1} parent=1 // loop_header
      %s22 = sphi 0, %s26
      %p23 = scmp.ge.s32.totalorder %s22, 4
      %s32 = sphi 0, %s34
      %s35 = sphi 0, %s32
      %s36 = sphi 0, %s35
      %s52 = sphi 0, %s36
      %s56 = sphi 0, %s56
      %s58 = sphi 0, %s56
      %s59 = sphi 0, %s58
      %s73 = sphi 0, %s59
      %s77 = sphi 0, %s77
      %s79 = sphi 0, %s77
      %s80 = sphi 0, %s79
      %s94 = sphi 0, %s80
      %s98 = sphi 0, %s98
      %s100 = sphi 0, %s98
      %s101 = sphi 0, %s100
      %s115 = sphi 0, %s101
      %s121 = sphi 0, %s123
      %s124 = sphi 0, %s121
      %s125 = sphi 0, %s124
      %s141 = sphi 0, %s125
      %s147 = sphi 0, %s149
      %s150 = sphi 0, %s147
      %s151 = sphi 0, %s150
      %s167 = sphi 0, %s151
    $region4: #{tpu_custom_call.1} parent=1 // loop_header_branch
      %25 = sbr.rel (%p23) target = $region8
    $region5: #{tpu_custom_call.1} parent=1 // loop_body
      %s27 = ssub.s32 %s22, 1
      %s28 = ssub.s32 %s22, 2
      %s29 = sadd.s32 %s22, 1
      %s30 = ssub.s32 %s22, %s29
      %p31 = scmp.eq.s32.totalorder %s30, 0
      %s33 = sadd.s32 %s32, 1
      %s34 = scalar_select %p31, %s32, %s33
      %p37 = pneg %p31
      %p38 = scmp.eq.s32.totalorder %s22, 1
      %p39 = por %p37, %p38
      %p40 = scmp.ne.s32.totalorder %s32, %s35
      %p41 = scmp.eq.s32.totalorder %s22, 0
      %p42 = por %p40, %p41
      %p43 = scmp.ne.s32.totalorder %s32, %s35
      %p44 = scmp.eq.s32.totalorder %s27, 1
      %p45 = por %p43, %p44
      %p46 = scmp.ne.s32.totalorder %s35, %s36
      %p47 = scmp.eq.s32.totalorder %s27, 0
      %p48 = por %p46, %p47
      %p49 = scmp.ne.s32.totalorder %s35, %s36
      %p50 = scmp.eq.s32.totalorder %s28, 1
      %p51 = por %p49, %p50
      %p53 = scmp.ne.s32.totalorder %s36, %s52
      %p54 = scmp.eq.s32.totalorder %s28, 0
      %p55 = por %p53, %p54
      %s57 = sadd.s32 %s56, 1
      %p60 = scmp.eq.s32.totalorder %s22, 1
      %p61 = scmp.ne.s32.totalorder %s56, %s58
      %p62 = scmp.eq.s32.totalorder %s22, 0
      %p63 = por %p61, %p62
      %p64 = scmp.ne.s32.totalorder %s56, %s58
      %p65 = scmp.eq.s32.totalorder %s27, 1
      %p66 = por %p64, %p65
      %p67 = scmp.ne.s32.totalorder %s58, %s59
      %p68 = scmp.eq.s32.totalorder %s27, 0
      %p69 = por %p67, %p68
      %p70 = scmp.ne.s32.totalorder %s58, %s59
      %p71 = scmp.eq.s32.totalorder %s28, 1
      %p72 = por %p70, %p71
      %p74 = scmp.ne.s32.totalorder %s59, %s73
      %p75 = scmp.eq.s32.totalorder %s28, 0
      %p76 = por %p74, %p75
      %s78 = sadd.s32 %s77, 1
      %p81 = scmp.eq.s32.totalorder %s22, 1
      %p82 = scmp.ne.s32.totalorder %s77, %s79
      %p83 = scmp.eq.s32.totalorder %s22, 0
      %p84 = por %p82, %p83
      %p85 = scmp.ne.s32.totalorder %s77, %s79
      %p86 = scmp.eq.s32.totalorder %s27, 1
      %p87 = por %p85, %p86
      %p88 = scmp.ne.s32.totalorder %s79, %s80
      %p89 = scmp.eq.s32.totalorder %s27, 0
      %p90 = por %p88, %p89
      %p91 = scmp.ne.s32.totalorder %s79, %s80
      %p92 = scmp.eq.s32.totalorder %s28, 1
      %p93 = por %p91, %p92
      %p95 = scmp.ne.s32.totalorder %s80, %s94
      %p96 = scmp.eq.s32.totalorder %s28, 0
      %p97 = por %p95, %p96
      %s99 = sadd.s32 %s98, 1
      %p102 = scmp.eq.s32.totalorder %s22, 1
      %p103 = scmp.ne.s32.totalorder %s98, %s100
      %p104 = scmp.eq.s32.totalorder %s22, 0
      %p105 = por %p103, %p104
      %p106 = scmp.ne.s32.totalorder %s98, %s100
      %p107 = scmp.eq.s32.totalorder %s27, 1
      %p108 = por %p106, %p107
      %p109 = scmp.ne.s32.totalorder %s100, %s101
      %p110 = scmp.eq.s32.totalorder %s27, 0
      %p111 = por %p109, %p110
      %p112 = scmp.ne.s32.totalorder %s100, %s101
      %p113 = scmp.eq.s32.totalorder %s28, 1
      %p114 = por %p112, %p113
      %p116 = scmp.ne.s32.totalorder %s101, %s115
      %p117 = scmp.eq.s32.totalorder %s28, 0
      %p118 = por %p116, %p117
      %s119 = ssub.s32 %s22, %s29
      %p120 = scmp.eq.s32.totalorder %s119, 0
      %s122 = sadd.s32 %s121, 1
      %s123 = scalar_select %p120, %s121, %s122
      %p126 = pneg %p120
      %p127 = scmp.eq.s32.totalorder %s22, 1
      %p128 = por %p126, %p127
      %p129 = scmp.ne.s32.totalorder %s121, %s124
      %p130 = scmp.eq.s32.totalorder %s22, 0
      %p131 = por %p129, %p130
      %p132 = scmp.ne.s32.totalorder %s121, %s124
      %p133 = scmp.eq.s32.totalorder %s27, 1
      %p134 = por %p132, %p133
      %p135 = scmp.ne.s32.totalorder %s124, %s125
      %p136 = scmp.eq.s32.totalorder %s27, 0
      %p137 = por %p135, %p136
      %p138 = scmp.ne.s32.totalorder %s124, %s125
      %p139 = scmp.eq.s32.totalorder %s28, 1
      %p140 = por %p138, %p139
      %p142 = scmp.ne.s32.totalorder %s125, %s141
      %p143 = scmp.eq.s32.totalorder %s28, 0
      %p144 = por %p142, %p143
      %s145 = ssub.s32 %s22, %s29
      %p146 = scmp.eq.s32.totalorder %s145, 0
      %s148 = sadd.s32 %s147, 1
      %s149 = scalar_select %p146, %s147, %s148
      %p152 = pneg %p146
      %p153 = scmp.eq.s32.totalorder %s22, 1
      %p154 = por %p152, %p153
      %p155 = scmp.ne.s32.totalorder %s147, %s150
      %p156 = scmp.eq.s32.totalorder %s22, 0
      %p157 = por %p155, %p156
      %p158 = scmp.ne.s32.totalorder %s147, %s150
      %p159 = scmp.eq.s32.totalorder %s27, 1
      %p160 = por %p158, %p159
      %p161 = scmp.ne.s32.totalorder %s150, %s151
      %p162 = scmp.eq.s32.totalorder %s27, 0
      %p163 = por %p161, %p162
      %p164 = scmp.ne.s32.totalorder %s150, %s151
      %p165 = scmp.eq.s32.totalorder %s28, 1
      %p166 = por %p164, %p165
      %p168 = scmp.ne.s32.totalorder %s151, %s167
      %p169 = scmp.eq.s32.totalorder %s28, 0
      %p170 = por %p168, %p169
      %p171 = scmp.le.s32.totalorder 1, %s22
      %p172 = scmp.lt.s32.totalorder %s22, 3
      %p173 = pnand %p171, %p172
      %p174 = pneg %p173
      // Predicated region
      $region9: #{tpu_custom_call.1} parent=5 // pred_check
        _
      $region10: #{tpu_custom_call.1} parent=5 // pred_check_branch
        %176 = sbr.rel (%p173) target = $region12
      $region11: #{tpu_custom_call.1} parent=5 // pred_region
        %s177 = ssub.s32 %s22, 1
        // Predicated region
        $region13: #{tpu_custom_call.1} parent=11 // pred_check
          %p178 = pneg %p69
        $region14: #{tpu_custom_call.1} parent=11 // pred_check_branch
          %180 = sbr.rel (%p178) target = $region16
        $region15: #{tpu_custom_call.1} parent=11 // pred_region
          %s182 = ssub.s32 256, 256
          %183 = vsyncadd [#allocation7], %s182
          %s184 = sshll.u32 [#allocation6], 4
          %s185 = int_to_ptr.vmem [resolvable:$true] %s184
          %190 = dma.hbm_to_vmem [thread:$0]  %s1, 256, %s185, [#allocation7], 64, 64, 4
        $region16: #{tpu_custom_call.1} parent=11 // pred_fallthru
          _
        // Predicated region
        $region17: #{tpu_custom_call.1} parent=11 // pred_check
          %p191 = pneg %p90
        $region18: #{tpu_custom_call.1} parent=11 // pred_check_branch
          %193 = sbr.rel (%p191) target = $region20
        $region19: #{tpu_custom_call.1} parent=11 // pred_region
          %s195 = ssub.s32 256, 256
          %196 = vsyncadd [#allocation7], %s195
          %s197 = sshll.u32 [#allocation8], 4
          %s198 = int_to_ptr.vmem [resolvable:$true] %s197
          %203 = dma.hbm_to_vmem [thread:$0]  %s2, 256, %s198, [#allocation7], 64, 64, 4
        $region20: #{tpu_custom_call.1} parent=11 // pred_fallthru
          _
        // Predicated region
        $region21: #{tpu_custom_call.1} parent=11 // pred_check
          %p204 = pneg %p111
        $region22: #{tpu_custom_call.1} parent=11 // pred_check_branch
          %206 = sbr.rel (%p204) target = $region24
        $region23: #{tpu_custom_call.1} parent=11 // pred_region
          _
        $region24: #{tpu_custom_call.1} parent=11 // pred_fallthru
          _
      $region12: #{tpu_custom_call.1} parent=5 // pred_fallthru
        _
      %p207 = scmp.lt.s32.totalorder %s22, 2
      // Predicated region
      $region25: #{tpu_custom_call.1} parent=5 // pred_check
        %p208 = pneg %p207
      $region26: #{tpu_custom_call.1} parent=5 // pred_check_branch
        %210 = sbr.rel (%p208) target = $region28
      $region27: #{tpu_custom_call.1} parent=5 // pred_region
        // Predicated region
        $region29: #{tpu_custom_call.1} parent=27 // pred_check
          %p211 = pneg %p42
        $region30: #{tpu_custom_call.1} parent=27 // pred_check_branch
          %213 = sbr.rel (%p211) target = $region32
        $region31: #{tpu_custom_call.1} parent=27 // pred_region
          %s214 = sand.u32 %s32, 1
          %s215 = scalar_lea.sflag [#allocation4], %s214
          %s216 = sand.u32 %s32, 1
          %s217 = smul.addr %s216, 16
          %s218 = scalar_lea.vmem [#allocation3], %s217
          %s219 = smul.u32 2, %s22
          %s221 = ssub.s32 256, 256
          %222 = vsyncadd %s215, %s221
          %s223 = smul.addr %s219, 128
          %s224 = scalar_lea.hbm %s0, %s223
          %s225 = sshll.u32 %s218, 4
          %s226 = int_to_ptr.vmem [resolvable:$true] %s225
          %231 = dma.hbm_to_vmem [thread:$0]  %s224, 256, %s226, %s215, 128, 128, 8
        $region32: #{tpu_custom_call.1} parent=27 // pred_fallthru
          _
      $region28: #{tpu_custom_call.1} parent=5 // pred_fallthru
        _
      %p232 = scmp.le.s32.totalorder 1, %s22
      %p233 = scmp.lt.s32.totalorder %s22, 3
      %p234 = pnand %p232, %p233
      %p235 = pneg %p234
      // Predicated region
      $region33: #{tpu_custom_call.1} parent=5 // pred_check
        _
      $region34: #{tpu_custom_call.1} parent=5 // pred_check_branch
        %237 = sbr.rel (%p234) target = $region36
      $region35: #{tpu_custom_call.1} parent=5 // pred_region
        %s238 = ssub.s32 %s22, 1
        %s239 = sand.u32 %s35, 1
        %s240 = scalar_lea.sflag [#allocation4], %s239
        %s241 = sand.u32 %s35, 1
        %s242 = smul.addr %s241, 16
        %s243 = scalar_lea.vmem [#allocation3], %s242
        // Predicated region
        $region37: #{tpu_custom_call.1} parent=35 // pred_check
          %p244 = pneg %p48
        $region38: #{tpu_custom_call.1} parent=35 // pred_check_branch
          %246 = sbr.rel (%p244) target = $region40
        $region39: #{tpu_custom_call.1} parent=35 // pred_region
          %247 = dma.done %s240, 256
        $region40: #{tpu_custom_call.1} parent=35 // pred_fallthru
          _
        // Predicated region
        $region41: #{tpu_custom_call.1} parent=35 // pred_check
          %p248 = pneg %p69
        $region42: #{tpu_custom_call.1} parent=35 // pred_check_branch
          %250 = sbr.rel (%p248) target = $region44
        $region43: #{tpu_custom_call.1} parent=35 // pred_region
          %251 = dma.done [#allocation7], 256
        $region44: #{tpu_custom_call.1} parent=35 // pred_fallthru
          _
        // Predicated region
        $region45: #{tpu_custom_call.1} parent=35 // pred_check
          %p252 = pneg %p90
        $region46: #{tpu_custom_call.1} parent=35 // pred_check_branch
          %254 = sbr.rel (%p252) target = $region48
        $region47: #{tpu_custom_call.1} parent=35 // pred_region
          %255 = dma.done [#allocation7], 256
        $region48: #{tpu_custom_call.1} parent=35 // pred_fallthru
          _
        %s256 = sand.u32 %s35, 1
        %s257 = scalar_lea.sflag [#allocation4], %s256
        %s258 = sand.u32 %s35, 1
        %s259 = smul.addr %s258, 16
        %s260 = scalar_lea.vmem [#allocation3], %s259
        %p261 = pneg %p48
        %p262 = pneg %p45
        %p263 = pneg %p69
        %p264 = pneg %p66
        %p265 = pneg %p90
        %p266 = pneg %p87
        %p267 = pneg %p111
        %p268 = pneg %p108
        %p269 = pneg %p137
        %p270 = pneg %p134
        %s271 = sand.u32 %s124, 1
        %s272 = scalar_lea.sflag [#allocation5], %s271
        %s273 = sand.u32 %s124, 1
        %s274 = smul.addr %s273, 16
        %s275 = scalar_lea.vmem [#allocation9], %s274
        %p276 = pneg %p163
        %p277 = pneg %p160
        %s278 = sand.u32 %s150, 1
        %s279 = scalar_lea.sflag [#allocation11], %s278
        %s280 = sand.u32 %s150, 1
        %s281 = smul.addr %s280, 32
        %s282 = scalar_lea.vmem [#allocation10], %s281
        %s283 = smul.u32 2, %s27
        %s284 = smul.u32 2, %s27
        %s285 = smul.u32 2, %s27
        %v287 = vld [vmem:[%s243] sm:$0xff]
        %v288 = vld [vmem:[%s243 + $0x8] sm:$0xff]
        %v289 = vpack.c.bf16 %v288, %v287
        %v290 = vld [vmem:[#allocation6] sm:$0xf]
        %v291 = vld [vmem:[#allocation6 + $0x4] sm:$0xf]
        %v292 = vld [vmem:[#allocation6 + $0x8] sm:$0xf]
        %v293 = vld [vmem:[#allocation6 + $0xc] sm:$0xf]
        %v298 = vunpack.c.l.b16 %v290
        %v299 = vunpack.c.l.b16 %v291
        %v300 = vunpack.c.l.b16 %v292
        %v301 = vunpack.c.l.b16 %v293
        %v302 = vpack.c.b16 %v299, %v298
        %v303 = vpack.c.b16 %v301, %v300
        %vm306 = vcmask 261120
        %v308 = vsel %vm306, %v289, 0
        %310 = vmatprep.subr.bf16.mxu0 0
        %311 = vmatpush1.bf16.msra.mxu0 0
        %312 = vmatprep.subr.bf16.mxu0 0
        %313 = vmatpush1.bf16.msra.mxu0 0
        %314 = vmatprep.subr.bf16.mxu0 0
        %315 = vmatpush1.bf16.msra.mxu0 0
        %316 = vmatprep.subr.bf16.mxu0 0
        %317 = vmatpush1.bf16.msra.mxu0 0
        %318 = vmatprep.subr.bf16.mxu0 0
        %319 = vmatpush1.bf16.msra.mxu0 0
        %320 = vmatprep.subr.bf16.mxu0 0
        %321 = vmatpush1.bf16.msra.mxu0 0
        %322 = vmatprep.subr.bf16.mxu0 0
        %323 = vmatpush1.bf16.msra.mxu0 %v303
        %324 = vmatprep.subr.bf16.mxu0 0
        %325 = vmatpush1.bf16.msra.mxu0 %v302
        %326 = vmatprep.subr.bf16.mxu0 0
        %327 = vmatpush2.bf16.msra.mxu0 0
        %328 = vmatprep.subr.bf16.mxu0 0
        %329 = vmatpush2.bf16.msra.mxu0 0
        %330 = vmatprep.subr.bf16.mxu0 0
        %331 = vmatpush2.bf16.msra.mxu0 0
        %332 = vmatprep.subr.bf16.mxu0 0
        %333 = vmatpush2.bf16.msra.mxu0 0
        %334 = vmatprep.subr.bf16.mxu0 0
        %335 = vmatpush2.bf16.msra.mxu0 0
        %336 = vmatprep.subr.bf16.mxu0 0
        %337 = vmatpush2.bf16.msra.mxu0 0
        %338 = vmatprep.subr.bf16.mxu0 0
        %339 = vmatpush2.bf16.msra.mxu0 0
        %340 = vmatprep.subr.bf16.mxu0 0
        %341 = vmatpush2.bf16.msra.mxu0 0
        %342 = vmatprep.mubr.bf16.mxu0 0
        %343 = vmatmul.mubr.bf16.gmra.mxu0 %v308
        %v344 = vpop.f32.mrf.mxu0
        %v345 = vadd.f32 0.0, %v344
        %v346 = vpop.f32.mrf.mxu0
        %v347 = vpop.f32.mrf.mxu0
        %v348 = vadd.f32 0.0, %v347
        %v349 = vpop.f32.mrf.mxu0
        %350 = vdwg.mxu0
        %v351 = vlaneseq
        %v352 = vshrl.u32 %v351, 7
        %v353 = vcvt.s32.f32 %v352
        %v354 = vlaneseq
        %v355 = vand.u32 %v354, 127
        %v356 = vcvt.s32.f32 %v355
        %v357 = vmul.f32 %v353, %v356
        %v358 = vmul.f32 %v357, 2.828427
        %v359 = vmul.f32 %v345, 0.17677669
        %v360 = vpack.c.bf16 %v359, %v359
        %v361 = vpack.c.bf16 %v345, %v345
        %vm362 = vcmask 130048
        %v363 = vsel %vm362, %v359, 0.0
        %364 = vadd.xlane.f32.xlu0 %v363
        %v365 = vpop.xlane.xlu0 %364
        %367 = vrot.lane.b32.xlu0 %v345, 96
        %v368 = vpop.permute.xlu0 %367
        %v370 = vsel %vm362, %v368, 0.0
        %371 = vadd.xlane.f32.xlu0 %v370
        %v372 = vpop.xlane.xlu0 %371
        %373 = vxpose.xlu0.b32.start [1/16] %v372, 128
        %374 = vxpose.xlu0.b32.cont [2/16] 0.0, 128
        %375 = vxpose.xlu0.b32.cont [3/16] 0.0, 128
        %376 = vxpose.xlu0.b32.cont [4/16] 0.0, 128
        %377 = vxpose.xlu0.b32.cont [5/16] 0.0, 128
        %378 = vxpose.xlu0.b32.cont [6/16] 0.0, 128
        %379 = vxpose.xlu0.b32.cont [7/16] 0.0, 128
        %380 = vxpose.xlu0.b32.cont [8/16] 0.0, 128
        %381 = vxpose.xlu0.b32.cont [9/16] 0.0, 128
        %382 = vxpose.xlu0.b32.cont [10/16] 0.0, 128
        %383 = vxpose.xlu0.b32.cont [11/16] 0.0, 128
        %384 = vxpose.xlu0.b32.cont [12/16] 0.0, 128
        %385 = vxpose.xlu0.b32.cont [13/16] 0.0, 128
        %386 = vxpose.xlu0.b32.cont [14/16] 0.0, 128
        %387 = vxpose.xlu0.b32.cont [15/16] 0.0, 128
        %388 = vxpose.xlu0.b32.end [16/16] 0.0, 128
        %v389 = vpop.trf.xlu0
        %v390 = vpop.trf.xlu0
        %v391 = vpop.trf.xlu0
        %v392 = vpop.trf.xlu0
        %v393 = vpop.trf.xlu0
        %v394 = vpop.trf.xlu0
        %v395 = vpop.trf.xlu0
        %v396 = vpop.trf.xlu0
        %v397 = vpop.trf.xlu0
        %v398 = vpop.trf.xlu0
        %v399 = vpop.trf.xlu0
        %v400 = vpop.trf.xlu0
        %v401 = vpop.trf.xlu0
        %v402 = vpop.trf.xlu0
        %v403 = vpop.trf.xlu0
        %v404 = vpop.trf.xlu0
        %v405 = vmul.f32 %v389, 0.17677669
        %v406 = vlaneseq
        %v407 = vshrl.u32 %v406, 7
        %v408 = vsub.s32 0, %v407
        %v409 = vrot.slane %v405, %v408
        %v410 = vmul.f32 %v353, %v409
        %412 = vrot.lane.b32.xlu0 %v361, 96
        %v413 = vpop.permute.xlu0 %412
        %v415 = vsel %vm362, %v360, 0
        %v418 = vsel %vm362, %v413, 0
        %420 = vmatprep.subr.bf16.mxu0 0
        %421 = vmatpush1.bf16.xpose.msra.mxu0 0
        %422 = vmatprep.subr.bf16.mxu0 0
        %423 = vmatpush1.bf16.xpose.msra.mxu0 0
        %424 = vmatprep.subr.bf16.mxu0 0
        %425 = vmatpush1.bf16.xpose.msra.mxu0 0
        %426 = vmatprep.subr.bf16.mxu0 0
        %427 = vmatpush1.bf16.xpose.msra.mxu0 0
        %428 = vmatprep.subr.bf16.mxu0 0
        %429 = vmatpush1.bf16.xpose.msra.mxu0 0
        %430 = vmatprep.subr.bf16.mxu0 0
        %431 = vmatpush1.bf16.xpose.msra.mxu0 0
        %432 = vmatprep.subr.bf16.mxu0 0
        %433 = vmatpush1.bf16.xpose.msra.mxu0 0
        %434 = vmatprep.subr.bf16.mxu0 0
        %435 = vmatpush1.bf16.xpose.msra.mxu0 %v418
        %436 = vmatprep.subr.bf16.mxu0 0
        %437 = vmatpush2.bf16.xpose.msra.mxu0 0
        %438 = vmatprep.subr.bf16.mxu0 0
        %439 = vmatpush2.bf16.xpose.msra.mxu0 0
        %440 = vmatprep.subr.bf16.mxu0 0
        %441 = vmatpush2.bf16.xpose.msra.mxu0 0
        %442 = vmatprep.subr.bf16.mxu0 0
        %443 = vmatpush2.bf16.xpose.msra.mxu0 0
        %444 = vmatprep.subr.bf16.mxu0 0
        %445 = vmatpush2.bf16.xpose.msra.mxu0 0
        %446 = vmatprep.subr.bf16.mxu0 0
        %447 = vmatpush2.bf16.xpose.msra.mxu0 0
        %448 = vmatprep.subr.bf16.mxu0 0
        %449 = vmatpush2.bf16.xpose.msra.mxu0 0
        %450 = vmatprep.subr.bf16.mxu0 0
        %451 = vmatpush2.bf16.xpose.msra.mxu0 0
        %452 = vmatprep.mubr.bf16.mxu0 0
        %453 = vmatmul.mubr.bf16.gmra.mxu0 %v415
        %v454 = vpop.f32.mrf.mxu0
        %v455 = vadd.f32 %v410, %v454
        %v456 = vpop.f32.mrf.mxu0
        %v457 = vpop.f32.mrf.mxu0
        %v458 = vpop.f32.mrf.mxu0
        %459 = vdwg.mxu0
        %v460 = vmul.f32 %v365, %v356
        %v461 = vadd.f32 %v455, %v460
        %v462 = vadd.f32 %v461, %v358
        %vm463 = vcmask 64512
        %v464 = vsel %vm463, %v462, -inf
        %465 = vmax.xlane.f32.xlu0 %v464
        %v466 = vpop.xlane.xlu0 %465
        %v467 = vsub.f32 %v462, %v466
        %v468 = vmul.f32 %v467, 1.442695
        %v469 = vpow.pop %v468
        %v470 = vsel %vm463, %v469, 0.0
        %471 = vadd.xlane.f32.xlu0 %v470
        %v472 = vpop.xlane.xlu0 %471
        %v473 = vrcp.pop %v472
        %v474 = vmul.f32 1.0, %v473
        %v475 = vmul.f32 %v469, %v474
        %476 = vst.msk [vmem:[%s282] sm:$0xff] %vm463, %v475
        %v477 = vpack.c.bf16 %v469, %v469
        %478 = vrot.lane.b32.xlu0 %v361, 64
        %v479 = vpop.permute.xlu0 %478
        %v481 = vsel %vm463, %v477, 0
        %vm483 = vcmask 1043456
        %v485 = vsel %vm483, %v479, 0
        %487 = vmatprep.subr.bf16.mxu0 0
        %488 = vmatpush1.bf16.msra.mxu0 0
        %489 = vmatprep.subr.bf16.mxu0 0
        %490 = vmatpush1.bf16.msra.mxu0 0
        %491 = vmatprep.subr.bf16.mxu0 0
        %492 = vmatpush1.bf16.msra.mxu0 0
        %493 = vmatprep.subr.bf16.mxu0 0
        %494 = vmatpush1.bf16.msra.mxu0 0
        %495 = vmatprep.subr.bf16.mxu0 0
        %496 = vmatpush1.bf16.msra.mxu0 0
        %497 = vmatprep.subr.bf16.mxu0 0
        %498 = vmatpush1.bf16.msra.mxu0 0
        %499 = vmatprep.subr.bf16.mxu0 0
        %500 = vmatpush1.bf16.msra.mxu0 0
        %501 = vmatprep.subr.bf16.mxu0 0
        %502 = vmatpush1.bf16.msra.mxu0 %v485
        %503 = vmatprep.subr.bf16.mxu0 0
        %504 = vmatpush2.bf16.msra.mxu0 0
        %505 = vmatprep.subr.bf16.mxu0 0
        %506 = vmatpush2.bf16.msra.mxu0 0
        %507 = vmatprep.subr.bf16.mxu0 0
        %508 = vmatpush2.bf16.msra.mxu0 0
        %509 = vmatprep.subr.bf16.mxu0 0
        %510 = vmatpush2.bf16.msra.mxu0 0
        %511 = vmatprep.subr.bf16.mxu0 0
        %512 = vmatpush2.bf16.msra.mxu0 0
        %513 = vmatprep.subr.bf16.mxu0 0
        %514 = vmatpush2.bf16.msra.mxu0 0
        %515 = vmatprep.subr.bf16.mxu0 0
        %516 = vmatpush2.bf16.msra.mxu0 0
        %517 = vmatprep.subr.bf16.mxu0 0
        %518 = vmatpush2.bf16.msra.mxu0 0
        %519 = vmatprep.mubr.bf16.mxu0 0
        %520 = vmatmul.mubr.bf16.gmra.mxu0 %v481
        %v521 = vpop.f32.mrf.mxu0
        %v522 = vadd.f32 0.0, %v521
        %v523 = vpop.f32.mrf.mxu0
        %v524 = vpop.f32.mrf.mxu0
        %v525 = vpop.f32.mrf.mxu0
        %526 = vdwg.mxu0
        %v527 = vmul.f32 %v522, %v474
        %528 = vst.msk [vmem:[#allocation2] sm:$0xff] %vm362, %v527
        %530 = vrot.lane.b32.xlu0 %v359, 112
        %v531 = vpop.permute.xlu0 %530
        %v533 = vsel %vm362, %v531, 0.0
        %534 = vadd.xlane.f32.xlu0 %v533
        %v535 = vpop.xlane.xlu0 %534
        %536 = vrot.lane.b32.xlu0 %v345, 80
        %v537 = vpop.permute.xlu0 %536
        %v539 = vsel %vm362, %v537, 0.0
        %540 = vadd.xlane.f32.xlu0 %v539
        %v541 = vpop.xlane.xlu0 %540
        %542 = vxpose.xlu0.b32.start [1/16] %v541, 128
        %543 = vxpose.xlu0.b32.cont [2/16] 0.0, 128
        %544 = vxpose.xlu0.b32.cont [3/16] 0.0, 128
        %545 = vxpose.xlu0.b32.cont [4/16] 0.0, 128
        %546 = vxpose.xlu0.b32.cont [5/16] 0.0, 128
        %547 = vxpose.xlu0.b32.cont [6/16] 0.0, 128
        %548 = vxpose.xlu0.b32.cont [7/16] 0.0, 128
        %549 = vxpose.xlu0.b32.cont [8/16] 0.0, 128
        %550 = vxpose.xlu0.b32.cont [9/16] 0.0, 128
        %551 = vxpose.xlu0.b32.cont [10/16] 0.0, 128
        %552 = vxpose.xlu0.b32.cont [11/16] 0.0, 128
        %553 = vxpose.xlu0.b32.cont [12/16] 0.0, 128
        %554 = vxpose.xlu0.b32.cont [13/16] 0.0, 128
        %555 = vxpose.xlu0.b32.cont [14/16] 0.0, 128
        %556 = vxpose.xlu0.b32.cont [15/16] 0.0, 128
        %557 = vxpose.xlu0.b32.end [16/16] 0.0, 128
        %v558 = vpop.trf.xlu0
        %v559 = vpop.trf.xlu0
        %v560 = vpop.trf.xlu0
        %v561 = vpop.trf.xlu0
        %v562 = vpop.trf.xlu0
        %v563 = vpop.trf.xlu0
        %v564 = vpop.trf.xlu0
        %v565 = vpop.trf.xlu0
        %v566 = vpop.trf.xlu0
        %v567 = vpop.trf.xlu0
        %v568 = vpop.trf.xlu0
        %v569 = vpop.trf.xlu0
        %v570 = vpop.trf.xlu0
        %v571 = vpop.trf.xlu0
        %v572 = vpop.trf.xlu0
        %v573 = vpop.trf.xlu0
        %v574 = vmul.f32 %v558, 0.17677669
        %v575 = vlaneseq
        %v576 = vshrl.u32 %v575, 7
        %v577 = vsub.s32 0, %v576
        %v578 = vrot.slane %v574, %v577
        %v579 = vmul.f32 %v353, %v578
        %581 = vrot.lane.b32.xlu0 %v360, 112
        %v582 = vpop.permute.xlu0 %581
        %583 = vrot.lane.b32.xlu0 %v361, 80
        %v584 = vpop.permute.xlu0 %583
        %v586 = vsel %vm362, %v582, 0
        %v589 = vsel %vm362, %v584, 0
        %591 = vmatprep.subr.bf16.mxu0 0
        %592 = vmatpush1.bf16.xpose.msra.mxu0 0
        %593 = vmatprep.subr.bf16.mxu0 0
        %594 = vmatpush1.bf16.xpose.msra.mxu0 0
        %595 = vmatprep.subr.bf16.mxu0 0
        %596 = vmatpush1.bf16.xpose.msra.mxu0 0
        %597 = vmatprep.subr.bf16.mxu0 0
        %598 = vmatpush1.bf16.xpose.msra.mxu0 0
        %599 = vmatprep.subr.bf16.mxu0 0
        %600 = vmatpush1.bf16.xpose.msra.mxu0 0
        %601 = vmatprep.subr.bf16.mxu0 0
        %602 = vmatpush1.bf16.xpose.msra.mxu0 0
        %603 = vmatprep.subr.bf16.mxu0 0
        %604 = vmatpush1.bf16.xpose.msra.mxu0 0
        %605 = vmatprep.subr.bf16.mxu0 0
        %606 = vmatpush1.bf16.xpose.msra.mxu0 %v589
        %607 = vmatprep.subr.bf16.mxu0 0
        %608 = vmatpush2.bf16.xpose.msra.mxu0 0
        %609 = vmatprep.subr.bf16.mxu0 0
        %610 = vmatpush2.bf16.xpose.msra.mxu0 0
        %611 = vmatprep.subr.bf16.mxu0 0
        %612 = vmatpush2.bf16.xpose.msra.mxu0 0
        %613 = vmatprep.subr.bf16.mxu0 0
        %614 = vmatpush2.bf16.xpose.msra.mxu0 0
        %615 = vmatprep.subr.bf16.mxu0 0
        %616 = vmatpush2.bf16.xpose.msra.mxu0 0
        %617 = vmatprep.subr.bf16.mxu0 0
        %618 = vmatpush2.bf16.xpose.msra.mxu0 0
        %619 = vmatprep.subr.bf16.mxu0 0
        %620 = vmatpush2.bf16.xpose.msra.mxu0 0
        %621 = vmatprep.subr.bf16.mxu0 0
        %622 = vmatpush2.bf16.xpose.msra.mxu0 0
        %623 = vmatprep.mubr.bf16.mxu0 0
        %624 = vmatmul.mubr.bf16.gmra.mxu0 %v586
        %v625 = vpop.f32.mrf.mxu0
        %v626 = vadd.f32 %v579, %v625
        %v627 = vpop.f32.mrf.mxu0
        %v628 = vpop.f32.mrf.mxu0
        %v629 = vpop.f32.mrf.mxu0
        %630 = vdwg.mxu0
        %v631 = vmul.f32 %v535, %v356
        %v632 = vadd.f32 %v626, %v631
        %v633 = vadd.f32 %v632, %v358
        %v634 = vsel %vm463, %v633, -inf
        %635 = vmax.xlane.f32.xlu0 %v634
        %v636 = vpop.xlane.xlu0 %635
        %v637 = vsub.f32 %v633, %v636
        %v638 = vmul.f32 %v637, 1.442695
        %v639 = vpow.pop %v638
        %v640 = vsel %vm463, %v639, 0.0
        %641 = vadd.xlane.f32.xlu0 %v640
        %v642 = vpop.xlane.xlu0 %641
        %v643 = vrcp.pop %v642
        %v644 = vmul.f32 1.0, %v643
        %v645 = vmul.f32 %v639, %v644
        %s646 = scalar_lea.vmem %s282, 8 [#allocation10]
        %647 = vst.msk [vmem:[%s646] sm:$0xff] %vm463, %v645
        %v648 = vpack.c.bf16 %v639, %v639
        %649 = vrot.lane.b32.xlu0 %v361, 48
        %v650 = vpop.permute.xlu0 %649
        %v652 = vsel %vm463, %v648, 0
        %v655 = vsel %vm483, %v650, 0
        %657 = vmatprep.subr.bf16.mxu0 0
        %658 = vmatpush1.bf16.msra.mxu0 0
        %659 = vmatprep.subr.bf16.mxu0 0
        %660 = vmatpush1.bf16.msra.mxu0 0
        %661 = vmatprep.subr.bf16.mxu0 0
        %662 = vmatpush1.bf16.msra.mxu0 0
        %663 = vmatprep.subr.bf16.mxu0 0
        %664 = vmatpush1.bf16.msra.mxu0 0
        %665 = vmatprep.subr.bf16.mxu0 0
        %666 = vmatpush1.bf16.msra.mxu0 0
        %667 = vmatprep.subr.bf16.mxu0 0
        %668 = vmatpush1.bf16.msra.mxu0 0
        %669 = vmatprep.subr.bf16.mxu0 0
        %670 = vmatpush1.bf16.msra.mxu0 0
        %671 = vmatprep.subr.bf16.mxu0 0
        %672 = vmatpush1.bf16.msra.mxu0 %v655
        %673 = vmatprep.subr.bf16.mxu0 0
        %674 = vmatpush2.bf16.msra.mxu0 0
        %675 = vmatprep.subr.bf16.mxu0 0
        %676 = vmatpush2.bf16.msra.mxu0 0
        %677 = vmatprep.subr.bf16.mxu0 0
        %678 = vmatpush2.bf16.msra.mxu0 0
        %679 = vmatprep.subr.bf16.mxu0 0
        %680 = vmatpush2.bf16.msra.mxu0 0
        %681 = vmatprep.subr.bf16.mxu0 0
        %682 = vmatpush2.bf16.msra.mxu0 0
        %683 = vmatprep.subr.bf16.mxu0 0
        %684 = vmatpush2.bf16.msra.mxu0 0
        %685 = vmatprep.subr.bf16.mxu0 0
        %686 = vmatpush2.bf16.msra.mxu0 0
        %687 = vmatprep.subr.bf16.mxu0 0
        %688 = vmatpush2.bf16.msra.mxu0 0
        %689 = vmatprep.mubr.bf16.mxu0 0
        %690 = vmatmul.mubr.bf16.gmra.mxu0 %v652
        %v691 = vpop.f32.mrf.mxu0
        %v692 = vadd.f32 0.0, %v691
        %v693 = vpop.f32.mrf.mxu0
        %v694 = vpop.f32.mrf.mxu0
        %v695 = vpop.f32.mrf.mxu0
        %696 = vdwg.mxu0
        %v697 = vmul.f32 %v692, %v644
        %699 = vrot.lane.b32.xlu0 %v697, 16
        %v700 = vpop.permute.xlu0 %699
        %vm702 = vcmask 261248
        %703 = vst.msk [vmem:[#allocation2] sm:$0xff] %vm702, %v700
        %v704 = vmul.f32 %v348, 0.17677669
        %v705 = vpack.c.bf16 %v704, %v704
        %v706 = vpack.c.bf16 %v348, %v348
        %v707 = vsel %vm362, %v704, 0.0
        %708 = vadd.xlane.f32.xlu0 %v707
        %v709 = vpop.xlane.xlu0 %708
        %711 = vrot.lane.b32.xlu0 %v348, 96
        %v712 = vpop.permute.xlu0 %711
        %v714 = vsel %vm362, %v712, 0.0
        %715 = vadd.xlane.f32.xlu0 %v714
        %v716 = vpop.xlane.xlu0 %715
        %717 = vxpose.xlu0.b32.start [1/16] %v716, 128
        %718 = vxpose.xlu0.b32.cont [2/16] 0.0, 128
        %719 = vxpose.xlu0.b32.cont [3/16] 0.0, 128
        %720 = vxpose.xlu0.b32.cont [4/16] 0.0, 128
        %721 = vxpose.xlu0.b32.cont [5/16] 0.0, 128
        %722 = vxpose.xlu0.b32.cont [6/16] 0.0, 128
        %723 = vxpose.xlu0.b32.cont [7/16] 0.0, 128
        %724 = vxpose.xlu0.b32.cont [8/16] 0.0, 128
        %725 = vxpose.xlu0.b32.cont [9/16] 0.0, 128
        %726 = vxpose.xlu0.b32.cont [10/16] 0.0, 128
        %727 = vxpose.xlu0.b32.cont [11/16] 0.0, 128
        %728 = vxpose.xlu0.b32.cont [12/16] 0.0, 128
        %729 = vxpose.xlu0.b32.cont [13/16] 0.0, 128
        %730 = vxpose.xlu0.b32.cont [14/16] 0.0, 128
        %731 = vxpose.xlu0.b32.cont [15/16] 0.0, 128
        %732 = vxpose.xlu0.b32.end [16/16] 0.0, 128
        %v733 = vpop.trf.xlu0
        %v734 = vpop.trf.xlu0
        %v735 = vpop.trf.xlu0
        %v736 = vpop.trf.xlu0
        %v737 = vpop.trf.xlu0
        %v738 = vpop.trf.xlu0
        %v739 = vpop.trf.xlu0
        %v740 = vpop.trf.xlu0
        %v741 = vpop.trf.xlu0
        %v742 = vpop.trf.xlu0
        %v743 = vpop.trf.xlu0
        %v744 = vpop.trf.xlu0
        %v745 = vpop.trf.xlu0
        %v746 = vpop.trf.xlu0
        %v747 = vpop.trf.xlu0
        %v748 = vpop.trf.xlu0
        %v749 = vmul.f32 %v733, 0.17677669
        %v750 = vlaneseq
        %v751 = vshrl.u32 %v750, 7
        %v752 = vsub.s32 0, %v751
        %v753 = vrot.slane %v749, %v752
        %v754 = vmul.f32 %v353, %v753
        %756 = vrot.lane.b32.xlu0 %v706, 96
        %v757 = vpop.permute.xlu0 %756
        %v759 = vsel %vm362, %v705, 0
        %v762 = vsel %vm362, %v757, 0
        %764 = vmatprep.subr.bf16.mxu0 0
        %765 = vmatpush1.bf16.xpose.msra.mxu0 0
        %766 = vmatprep.subr.bf16.mxu0 0
        %767 = vmatpush1.bf16.xpose.msra.mxu0 0
        %768 = vmatprep.subr.bf16.mxu0 0
        %769 = vmatpush1.bf16.xpose.msra.mxu0 0
        %770 = vmatprep.subr.bf16.mxu0 0
        %771 = vmatpush1.bf16.xpose.msra.mxu0 0
        %772 = vmatprep.subr.bf16.mxu0 0
        %773 = vmatpush1.bf16.xpose.msra.mxu0 0
        %774 = vmatprep.subr.bf16.mxu0 0
        %775 = vmatpush1.bf16.xpose.msra.mxu0 0
        %776 = vmatprep.subr.bf16.mxu0 0
        %777 = vmatpush1.bf16.xpose.msra.mxu0 0
        %778 = vmatprep.subr.bf16.mxu0 0
        %779 = vmatpush1.bf16.xpose.msra.mxu0 %v762
        %780 = vmatprep.subr.bf16.mxu0 0
        %781 = vmatpush2.bf16.xpose.msra.mxu0 0
        %782 = vmatprep.subr.bf16.mxu0 0
        %783 = vmatpush2.bf16.xpose.msra.mxu0 0
        %784 = vmatprep.subr.bf16.mxu0 0
        %785 = vmatpush2.bf16.xpose.msra.mxu0 0
        %786 = vmatprep.subr.bf16.mxu0 0
        %787 = vmatpush2.bf16.xpose.msra.mxu0 0
        %788 = vmatprep.subr.bf16.mxu0 0
        %789 = vmatpush2.bf16.xpose.msra.mxu0 0
        %790 = vmatprep.subr.bf16.mxu0 0
        %791 = vmatpush2.bf16.xpose.msra.mxu0 0
        %792 = vmatprep.subr.bf16.mxu0 0
        %793 = vmatpush2.bf16.xpose.msra.mxu0 0
        %794 = vmatprep.subr.bf16.mxu0 0
        %795 = vmatpush2.bf16.xpose.msra.mxu0 0
        %796 = vmatprep.mubr.bf16.mxu0 0
        %797 = vmatmul.mubr.bf16.gmra.mxu0 %v759
        %v798 = vpop.f32.mrf.mxu0
        %v799 = vadd.f32 %v754, %v798
        %v800 = vpop.f32.mrf.mxu0
        %v801 = vpop.f32.mrf.mxu0
        %v802 = vpop.f32.mrf.mxu0
        %803 = vdwg.mxu0
        %v804 = vmul.f32 %v709, %v356
        %v805 = vadd.f32 %v799, %v804
        %v806 = vadd.f32 %v805, %v358
        %v807 = vsel %vm463, %v806, -inf
        %808 = vmax.xlane.f32.xlu0 %v807
        %v809 = vpop.xlane.xlu0 %808
        %v810 = vsub.f32 %v806, %v809
        %v811 = vmul.f32 %v810, 1.442695
        %v812 = vpow.pop %v811
        %v813 = vsel %vm463, %v812, 0.0
        %814 = vadd.xlane.f32.xlu0 %v813
        %v815 = vpop.xlane.xlu0 %814
        %v816 = vrcp.pop %v815
        %v817 = vmul.f32 1.0, %v816
        %v818 = vmul.f32 %v812, %v817
        %s819 = scalar_lea.vmem %s282, 16 [#allocation10]
        %820 = vst.msk [vmem:[%s819] sm:$0xff] %vm463, %v818
        %v821 = vpack.c.bf16 %v812, %v812
        %822 = vrot.lane.b32.xlu0 %v706, 64
        %v823 = vpop.permute.xlu0 %822
        %v825 = vsel %vm463, %v821, 0
        %v828 = vsel %vm483, %v823, 0
        %830 = vmatprep.subr.bf16.mxu0 0
        %831 = vmatpush1.bf16.msra.mxu0 0
        %832 = vmatprep.subr.bf16.mxu0 0
        %833 = vmatpush1.bf16.msra.mxu0 0
        %834 = vmatprep.subr.bf16.mxu0 0
        %835 = vmatpush1.bf16.msra.mxu0 0
        %836 = vmatprep.subr.bf16.mxu0 0
        %837 = vmatpush1.bf16.msra.mxu0 0
        %838 = vmatprep.subr.bf16.mxu0 0
        %839 = vmatpush1.bf16.msra.mxu0 0
        %840 = vmatprep.subr.bf16.mxu0 0
        %841 = vmatpush1.bf16.msra.mxu0 0
        %842 = vmatprep.subr.bf16.mxu0 0
        %843 = vmatpush1.bf16.msra.mxu0 0
        %844 = vmatprep.subr.bf16.mxu0 0
        %845 = vmatpush1.bf16.msra.mxu0 %v828
        %846 = vmatprep.subr.bf16.mxu0 0
        %847 = vmatpush2.bf16.msra.mxu0 0
        %848 = vmatprep.subr.bf16.mxu0 0
        %849 = vmatpush2.bf16.msra.mxu0 0
        %850 = vmatprep.subr.bf16.mxu0 0
        %851 = vmatpush2.bf16.msra.mxu0 0
        %852 = vmatprep.subr.bf16.mxu0 0
        %853 = vmatpush2.bf16.msra.mxu0 0
        %854 = vmatprep.subr.bf16.mxu0 0
        %855 = vmatpush2.bf16.msra.mxu0 0
        %856 = vmatprep.subr.bf16.mxu0 0
        %857 = vmatpush2.bf16.msra.mxu0 0
        %858 = vmatprep.subr.bf16.mxu0 0
        %859 = vmatpush2.bf16.msra.mxu0 0
        %860 = vmatprep.subr.bf16.mxu0 0
        %861 = vmatpush2.bf16.msra.mxu0 0
        %862 = vmatprep.mubr.bf16.mxu0 0
        %863 = vmatmul.mubr.bf16.gmra.mxu0 %v825
        %v864 = vpop.f32.mrf.mxu0
        %v865 = vadd.f32 0.0, %v864
        %v866 = vpop.f32.mrf.mxu0
        %v867 = vpop.f32.mrf.mxu0
        %v868 = vpop.f32.mrf.mxu0
        %869 = vdwg.mxu0
        %v870 = vmul.f32 %v865, %v817
        %871 = vst.msk [vmem:[#allocation2 + $0x8] sm:$0xff] %vm362, %v870
        %873 = vrot.lane.b32.xlu0 %v704, 112
        %v874 = vpop.permute.xlu0 %873
        %v876 = vsel %vm362, %v874, 0.0
        %877 = vadd.xlane.f32.xlu0 %v876
        %v878 = vpop.xlane.xlu0 %877
        %879 = vrot.lane.b32.xlu0 %v348, 80
        %v880 = vpop.permute.xlu0 %879
        %v882 = vsel %vm362, %v880, 0.0
        %883 = vadd.xlane.f32.xlu0 %v882
        %v884 = vpop.xlane.xlu0 %883
        %885 = vxpose.xlu0.b32.start [1/16] %v884, 128
        %886 = vxpose.xlu0.b32.cont [2/16] 0.0, 128
        %887 = vxpose.xlu0.b32.cont [3/16] 0.0, 128
        %888 = vxpose.xlu0.b32.cont [4/16] 0.0, 128
        %889 = vxpose.xlu0.b32.cont [5/16] 0.0, 128
        %890 = vxpose.xlu0.b32.cont [6/16] 0.0, 128
        %891 = vxpose.xlu0.b32.cont [7/16] 0.0, 128
        %892 = vxpose.xlu0.b32.cont [8/16] 0.0, 128
        %893 = vxpose.xlu0.b32.cont [9/16] 0.0, 128
        %894 = vxpose.xlu0.b32.cont [10/16] 0.0, 128
        %895 = vxpose.xlu0.b32.cont [11/16] 0.0, 128
        %896 = vxpose.xlu0.b32.cont [12/16] 0.0, 128
        %897 = vxpose.xlu0.b32.cont [13/16] 0.0, 128
        %898 = vxpose.xlu0.b32.cont [14/16] 0.0, 128
        %899 = vxpose.xlu0.b32.cont [15/16] 0.0, 128
        %900 = vxpose.xlu0.b32.end [16/16] 0.0, 128
        %v901 = vpop.trf.xlu0
        %v902 = vpop.trf.xlu0
        %v903 = vpop.trf.xlu0
        %v904 = vpop.trf.xlu0
        %v905 = vpop.trf.xlu0
        %v906 = vpop.trf.xlu0
        %v907 = vpop.trf.xlu0
        %v908 = vpop.trf.xlu0
        %v909 = vpop.trf.xlu0
        %v910 = vpop.trf.xlu0
        %v911 = vpop.trf.xlu0
        %v912 = vpop.trf.xlu0
        %v913 = vpop.trf.xlu0
        %v914 = vpop.trf.xlu0
        %v915 = vpop.trf.xlu0
        %v916 = vpop.trf.xlu0
        %v917 = vmul.f32 %v901, 0.17677669
        %v918 = vlaneseq
        %v919 = vshrl.u32 %v918, 7
        %v920 = vsub.s32 0, %v919
        %v921 = vrot.slane %v917, %v920
        %v922 = vmul.f32 %v353, %v921
        %924 = vrot.lane.b32.xlu0 %v705, 112
        %v925 = vpop.permute.xlu0 %924
        %926 = vrot.lane.b32.xlu0 %v706, 80
        %v927 = vpop.permute.xlu0 %926
        %v929 = vsel %vm362, %v925, 0
        %v932 = vsel %vm362, %v927, 0
        %934 = vmatprep.subr.bf16.mxu0 0
        %935 = vmatpush1.bf16.xpose.msra.mxu0 0
        %936 = vmatprep.subr.bf16.mxu0 0
        %937 = vmatpush1.bf16.xpose.msra.mxu0 0
        %938 = vmatprep.subr.bf16.mxu0 0
        %939 = vmatpush1.bf16.xpose.msra.mxu0 0
        %940 = vmatprep.subr.bf16.mxu0 0
        %941 = vmatpush1.bf16.xpose.msra.mxu0 0
        %942 = vmatprep.subr.bf16.mxu0 0
        %943 = vmatpush1.bf16.xpose.msra.mxu0 0
        %944 = vmatprep.subr.bf16.mxu0 0
        %945 = vmatpush1.bf16.xpose.msra.mxu0 0
        %946 = vmatprep.subr.bf16.mxu0 0
        %947 = vmatpush1.bf16.xpose.msra.mxu0 0
        %948 = vmatprep.subr.bf16.mxu0 0
        %949 = vmatpush1.bf16.xpose.msra.mxu0 %v932
        %950 = vmatprep.subr.bf16.mxu0 0
        %951 = vmatpush2.bf16.xpose.msra.mxu0 0
        %952 = vmatprep.subr.bf16.mxu0 0
        %953 = vmatpush2.bf16.xpose.msra.mxu0 0
        %954 = vmatprep.subr.bf16.mxu0 0
        %955 = vmatpush2.bf16.xpose.msra.mxu0 0
        %956 = vmatprep.subr.bf16.mxu0 0
        %957 = vmatpush2.bf16.xpose.msra.mxu0 0
        %958 = vmatprep.subr.bf16.mxu0 0
        %959 = vmatpush2.bf16.xpose.msra.mxu0 0
        %960 = vmatprep.subr.bf16.mxu0 0
        %961 = vmatpush2.bf16.xpose.msra.mxu0 0
        %962 = vmatprep.subr.bf16.mxu0 0
        %963 = vmatpush2.bf16.xpose.msra.mxu0 0
        %964 = vmatprep.subr.bf16.mxu0 0
        %965 = vmatpush2.bf16.xpose.msra.mxu0 0
        %966 = vmatprep.mubr.bf16.mxu0 0
        %967 = vmatmul.mubr.bf16.gmra.mxu0 %v929
        %v968 = vpop.f32.mrf.mxu0
        %v969 = vadd.f32 %v922, %v968
        %v970 = vpop.f32.mrf.mxu0
        %v971 = vpop.f32.mrf.mxu0
        %v972 = vpop.f32.mrf.mxu0
        %973 = vdwg.mxu0
        %v974 = vmul.f32 %v878, %v356
        %v975 = vadd.f32 %v969, %v974
        %v976 = vadd.f32 %v975, %v358
        %v977 = vsel %vm463, %v976, -inf
        %978 = vmax.xlane.f32.xlu0 %v977
        %v979 = vpop.xlane.xlu0 %978
        %v980 = vsub.f32 %v976, %v979
        %v981 = vmul.f32 %v980, 1.442695
        %v982 = vpow.pop %v981
        %v983 = vsel %vm463, %v982, 0.0
        %984 = vadd.xlane.f32.xlu0 %v983
        %v985 = vpop.xlane.xlu0 %984
        %v986 = vrcp.pop %v985
        %v987 = vmul.f32 1.0, %v986
        %v988 = vmul.f32 %v982, %v987
        %s989 = scalar_lea.vmem %s282, 24 [#allocation10]
        %990 = vst.msk [vmem:[%s989] sm:$0xff] %vm463, %v988
        %v991 = vpack.c.bf16 %v982, %v982
        %992 = vrot.lane.b32.xlu0 %v706, 48
        %v993 = vpop.permute.xlu0 %992
        %v995 = vsel %vm463, %v991, 0
        %v998 = vsel %vm483, %v993, 0
        %1000 = vmatprep.subr.bf16.mxu0 0
        %1001 = vmatpush1.bf16.msra.mxu0 0
        %1002 = vmatprep.subr.bf16.mxu0 0
        %1003 = vmatpush1.bf16.msra.mxu0 0
        %1004 = vmatprep.subr.bf16.mxu0 0
        %1005 = vmatpush1.bf16.msra.mxu0 0
        %1006 = vmatprep.subr.bf16.mxu0 0
        %1007 = vmatpush1.bf16.msra.mxu0 0
        %1008 = vmatprep.subr.bf16.mxu0 0
        %1009 = vmatpush1.bf16.msra.mxu0 0
        %1010 = vmatprep.subr.bf16.mxu0 0
        %1011 = vmatpush1.bf16.msra.mxu0 0
        %1012 = vmatprep.subr.bf16.mxu0 0
        %1013 = vmatpush1.bf16.msra.mxu0 0
        %1014 = vmatprep.subr.bf16.mxu0 0
        %1015 = vmatpush1.bf16.msra.mxu0 %v998
        %1016 = vmatprep.subr.bf16.mxu0 0
        %1017 = vmatpush2.bf16.msra.mxu0 0
        %1018 = vmatprep.subr.bf16.mxu0 0
        %1019 = vmatpush2.bf16.msra.mxu0 0
        %1020 = vmatprep.subr.bf16.mxu0 0
        %1021 = vmatpush2.bf16.msra.mxu0 0
        %1022 = vmatprep.subr.bf16.mxu0 0
        %1023 = vmatpush2.bf16.msra.mxu0 0
        %1024 = vmatprep.subr.bf16.mxu0 0
        %1025 = vmatpush2.bf16.msra.mxu0 0
        %1026 = vmatprep.subr.bf16.mxu0 0
        %1027 = vmatpush2.bf16.msra.mxu0 0
        %1028 = vmatprep.subr.bf16.mxu0 0
        %1029 = vmatpush2.bf16.msra.mxu0 0
        %1030 = vmatprep.subr.bf16.mxu0 0
        %1031 = vmatpush2.bf16.msra.mxu0 0
        %1032 = vmatprep.mubr.bf16.mxu0 0
        %1033 = vmatmul.mubr.bf16.gmra.mxu0 %v995
        %v1034 = vpop.f32.mrf.mxu0
        %v1035 = vadd.f32 0.0, %v1034
        %v1036 = vpop.f32.mrf.mxu0
        %v1037 = vpop.f32.mrf.mxu0
        %v1038 = vpop.f32.mrf.mxu0
        %1039 = vdwg.mxu0
        %v1040 = vmul.f32 %v1035, %v987
        %1042 = vrot.lane.b32.xlu0 %v1040, 16
        %v1043 = vpop.permute.xlu0 %1042
        %1045 = vst.msk [vmem:[#allocation2 + $0x8] sm:$0xff] %vm702, %v1043
        %v1046 = vld [vmem:[#allocation2] sm:$0xff]
        %v1047 = vld [vmem:[#allocation2 + $0x8] sm:$0xff]
        %v1048 = vpack.c.bf16 %v1047, %v1046
        %v1049 = vld [vmem:[#allocation8] sm:$0xf]
        %v1050 = vld [vmem:[#allocation8 + $0x4] sm:$0xf]
        %v1051 = vld [vmem:[#allocation8 + $0x8] sm:$0xf]
        %v1052 = vld [vmem:[#allocation8 + $0xc] sm:$0xf]
        %v1053 = vld [vmem:[%s3] sm:$0x1]
        %v1055 = vlaneseq
        %v1056 = vshrl.u32 %v1055, 7
        %v1057 = vsub.s32 0, %v1056
        %v1058 = vrot.slane %v1053, %v1057
        %v1064 = vunpack.c.l.b16 %v1049
        %v1065 = vunpack.c.l.b16 %v1050
        %v1066 = vunpack.c.l.b16 %v1051
        %v1067 = vunpack.c.l.b16 %v1052
        %v1068 = vpack.c.b16 %v1065, %v1064
        %v1069 = vpack.c.b16 %v1067, %v1066
        %v1073 = vsel %vm306, %v1048, 0
        %1075 = vmatprep.subr.bf16.mxu0 0
        %1076 = vmatpush1.bf16.msra.mxu0 0
        %1077 = vmatprep.subr.bf16.mxu0 0
        %1078 = vmatpush1.bf16.msra.mxu0 0
        %1079 = vmatprep.subr.bf16.mxu0 0
        %1080 = vmatpush1.bf16.msra.mxu0 0
        %1081 = vmatprep.subr.bf16.mxu0 0
        %1082 = vmatpush1.bf16.msra.mxu0 0
        %1083 = vmatprep.subr.bf16.mxu0 0
        %1084 = vmatpush1.bf16.msra.mxu0 0
        %1085 = vmatprep.subr.bf16.mxu0 0
        %1086 = vmatpush1.bf16.msra.mxu0 0
        %1087 = vmatprep.subr.bf16.mxu0 0
        %1088 = vmatpush1.bf16.msra.mxu0 %v1069
        %1089 = vmatprep.subr.bf16.mxu0 0
        %1090 = vmatpush1.bf16.msra.mxu0 %v1068
        %1091 = vmatprep.subr.bf16.mxu0 0
        %1092 = vmatpush2.bf16.msra.mxu0 0
        %1093 = vmatprep.subr.bf16.mxu0 0
        %1094 = vmatpush2.bf16.msra.mxu0 0
        %1095 = vmatprep.subr.bf16.mxu0 0
        %1096 = vmatpush2.bf16.msra.mxu0 0
        %1097 = vmatprep.subr.bf16.mxu0 0
        %1098 = vmatpush2.bf16.msra.mxu0 0
        %1099 = vmatprep.subr.bf16.mxu0 0
        %1100 = vmatpush2.bf16.msra.mxu0 0
        %1101 = vmatprep.subr.bf16.mxu0 0
        %1102 = vmatpush2.bf16.msra.mxu0 0
        %1103 = vmatprep.subr.bf16.mxu0 0
        %1104 = vmatpush2.bf16.msra.mxu0 0
        %1105 = vmatprep.subr.bf16.mxu0 0
        %1106 = vmatpush2.bf16.msra.mxu0 0
        %1107 = vmatprep.mubr.bf16.mxu0 0
        %1108 = vmatmul.mubr.bf16.gmra.mxu0 %v1073
        %v1109 = vpop.f32.mrf.mxu0
        %v1110 = vadd.f32 %v1058, %v1109
        %v1111 = vpop.f32.mrf.mxu0
        %v1112 = vpop.f32.mrf.mxu0
        %v1113 = vadd.f32 %v1058, %v1112
        %v1114 = vpop.f32.mrf.mxu0
        %1115 = vdwg.mxu0
        %1116 = vst.msk [vmem:[%s275] sm:$0xff] %vm306, %v1110
        %1117 = vst.msk [vmem:[%s275 + $0x8] sm:$0xff] %vm306, %v1113
        %s1118 = sand.u32 %s124, 1
        %s1119 = scalar_lea.sflag [#allocation5], %s1118
        %s1120 = sand.u32 %s124, 1
        %s1121 = smul.addr %s1120, 16
        %s1122 = scalar_lea.vmem [#allocation9], %s1121
        %s1123 = sand.u32 %s150, 1
        %s1124 = scalar_lea.sflag [#allocation11], %s1123
        %s1125 = sand.u32 %s150, 1
        %s1126 = smul.addr %s1125, 32
        %s1127 = scalar_lea.vmem [#allocation10], %s1126
        // Predicated region
        $region49: #{tpu_custom_call.1} parent=35 // pred_check
          %p1128 = pneg %p134
        $region50: #{tpu_custom_call.1} parent=35 // pred_check_branch
          %1130 = sbr.rel (%p1128) target = $region52
        $region51: #{tpu_custom_call.1} parent=35 // pred_region
          %s1131 = smul.u32 2, %s27
          %s1133 = ssub.s32 256, 256
          %1134 = vsyncadd %s1119, %s1133
          %s1135 = smul.addr %s1131, 128
          %s1136 = scalar_lea.hbm %s4, %s1135
          %s1137 = sshll.u32 %s1122, 4
          %s1138 = int_to_ptr.vmem [resolvable:$true] %s1137
          %1143 = dma.vmem_to_hbm [thread:$0]  %s1138, 256, %s1136, %s1119, 128, 128, 8
        $region52: #{tpu_custom_call.1} parent=35 // pred_fallthru
          _
        // Predicated region
        $region53: #{tpu_custom_call.1} parent=35 // pred_check
          %p1144 = pneg %p160
        $region54: #{tpu_custom_call.1} parent=35 // pred_check_branch
          %1146 = sbr.rel (%p1144) target = $region56
        $region55: #{tpu_custom_call.1} parent=35 // pred_region
          %s1147 = smul.u32 2, %s27
          %s1149 = ssub.s32 512, 512
          %1150 = vsyncadd %s1124, %s1149
          %s1151 = smul.addr %s1147, 2
          %s1152 = smul.addr %s1151, 128
          %s1153 = scalar_lea.hbm %s5, %s1152
          %s1154 = sshll.u32 %s1127, 4
          %s1155 = int_to_ptr.vmem [resolvable:$true] %s1154
          %1160 = dma.vmem_to_hbm [thread:$0]  %s1155, 512, %s1153, %s1124, 128, 128, 8
        $region56: #{tpu_custom_call.1} parent=35 // pred_fallthru
          _
      $region36: #{tpu_custom_call.1} parent=5 // pred_fallthru
        _
      %p1161 = scmp.le.s32.totalorder 2, %s22
      // Predicated region
      $region57: #{tpu_custom_call.1} parent=5 // pred_check
        %p1162 = pneg %p1161
      $region58: #{tpu_custom_call.1} parent=5 // pred_check_branch
        %1164 = sbr.rel (%p1162) target = $region60
      $region59: #{tpu_custom_call.1} parent=5 // pred_region
        %s1165 = ssub.s32 %s22, 2
        // Predicated region
        $region61: #{tpu_custom_call.1} parent=59 // pred_check
          %p1166 = pneg %p140
        $region62: #{tpu_custom_call.1} parent=59 // pred_check_branch
          %1168 = sbr.rel (%p1166) target = $region64
        $region63: #{tpu_custom_call.1} parent=59 // pred_region
          %s1169 = sand.u32 %s125, 1
          %s1170 = scalar_lea.sflag [#allocation5], %s1169
          %s1171 = sand.u32 %s125, 1
          %s1172 = smul.addr %s1171, 16
          %s1173 = scalar_lea.vmem [#allocation9], %s1172
          %1174 = dma.done %s1170, 256
        $region64: #{tpu_custom_call.1} parent=59 // pred_fallthru
          _
        // Predicated region
        $region65: #{tpu_custom_call.1} parent=59 // pred_check
          %p1175 = pneg %p166
        $region66: #{tpu_custom_call.1} parent=59 // pred_check_branch
          %1177 = sbr.rel (%p1175) target = $region68
        $region67: #{tpu_custom_call.1} parent=59 // pred_region
          %s1178 = sand.u32 %s151, 1
          %s1179 = scalar_lea.sflag [#allocation11], %s1178
          %s1180 = sand.u32 %s151, 1
          %s1181 = smul.addr %s1180, 32
          %s1182 = scalar_lea.vmem [#allocation10], %s1181
          %1183 = dma.done %s1179, 512
        $region68: #{tpu_custom_call.1} parent=59 // pred_fallthru
          _
      $region60: #{tpu_custom_call.1} parent=5 // pred_fallthru
        _
    $region6: #{tpu_custom_call.1} parent=1 // loop_footer
      %s26 = sadd.s32 1, %s22
    $region7: #{tpu_custom_call.1} parent=1 // loop_footer_branch
      %21 = sbr.rel target = $region3
    $region8: #{tpu_custom_call.1} parent=1 // loop_exit
      _
    %1184 = vsyncpa [#allocation4], 1
    %s1185 = scalar_lea.sflag [#allocation4], 1
    %1186 = vsyncpa %s1185, 1
    %1187 = vsyncpa [#allocation7], 1
    %1188 = vsyncpa [#allocation5], 1
    %s1189 = scalar_lea.sflag [#allocation5], 1
    %1190 = vsyncpa %s1189, 1
    %1191 = vsyncpa [#allocation11], 1
    %s1192 = scalar_lea.sflag [#allocation11], 1
    %1193 = vsyncpa %s1192, 1

</llo_original>
